<compile_context>
chip_gen: v7x
topology: tpu7x:2x2x1
jax: 0.10.0
libtpu: 0.0.40
codegen_flags: <defaults>
</compile_context>

<pallas_src>
import math

import jax
import jax.numpy as jnp
from jax.experimental import pallas as pl
from jax.experimental.pallas import tpu as pltpu

# ------------------------- small synthetic BERT config -----------------------
BATCH = 2
SEQ = 8
HIDDEN = 32
NUM_HEADS = 2
HEAD_DIM = HIDDEN // NUM_HEADS
INTERMEDIATE = 64
NUM_LAYERS = 2
VOCAB = 64            # stands in for len(tokenizer)
PAD_W = 128           # lane-dense slab width / padded vocab width
TYPE_VOCAB = 2
MAX_POS = 128
LN_EPS = 1e-12        # BERT LayerNorm eps
BS = BATCH * SEQ
NEG_INF = -1e9
_ATT_SCALE = 1.0 / math.sqrt(HEAD_DIM)


# ----------------------------- slab row layouts -------------------------------
def _build_f32_layout():
    """f32 slab (width 128): activations + attention bias + all vector params."""
    rows, r = {}, 0

    def add(name, n):
        nonlocal r
        rows[name] = r
        r += n

    add('emb', BS)
    add('det', BS)
    add('abias', BS)                      # (BS, BS) block-diagonal additive bias
    add('emb_ln_g', 1)
    add('emb_ln_b', 1)
    for l in range(NUM_LAYERS):
        for h in range(NUM_HEADS):
            add(f'bq_{l}_{h}', 1)
            add(f'bk_{l}_{h}', 1)
            add(f'bv_{l}_{h}', 1)
        add(f'bo_{l}', 1)
        add(f'ln1_g_{l}', 1)
        add(f'ln1_b_{l}', 1)
        add(f'bi_{l}', 1)
        add(f'bf_{l}', 1)
        add(f'ln2_g_{l}', 1)
        add(f'ln2_b_{l}', 1)
    add('dense_b', 1)
    total = ((r + 7) // 8) * 8            # f32 sublane tile = 8 rows
    return rows, total


def _build_w_layout():
    """bf16 slab (width 128): every matmul weight, 16-row aligned blocks."""
    rows, r = {}, 0

    def add(name, n):
        nonlocal r
        rows[name] = r
        r += n

    for l in range(NUM_LAYERS):
        for h in range(NUM_HEADS):
            add(f'wq_{l}_{h}', HIDDEN)    # (H, Dh), attention scale folded in
            add(f'wk_{l}_{h}', HIDDEN)    # (H, Dh)
            add(f'wv_{l}_{h}', HIDDEN)    # (H, Dh)
        for h in range(NUM_HEADS):
            add(f'wo_{l}_{h}', HEAD_DIM)  # (Dh, H)
        add(f'wi_{l}', HIDDEN)            # (H, I)
        add(f'wf_{l}', INTERMEDIATE)      # (I, H)
    add('dense_w', HIDDEN)                # (H, PAD_W), zero-padded past VOCAB
    total = ((r + 15) // 16) * 16         # bf16 sublane tile = 16 rows
    return rows, total


F32_ROWS, F32_TOTAL = _build_f32_layout()
W_ROWS, W_TOTAL = _build_w_layout()
VEC_BASE = 3 * BS                         # first vector-param row in the f32 slab


# ------------------------------ fused Pallas kernel --------------------------
def _fused_forward_kernel(p_ref, w_ref, out_ref):
    """Entire CorrectionNetwork forward on two VMEM-resident slabs.

    p_ref:  (F32_TOTAL, 128) f32  — emb / det / attention bias / vector params
    w_ref:  (W_TOTAL,   128) bf16 — all matmul weights
    out_ref:(BS, 128)        f32  — padded vocab logits (lane-dense store)
    """
    f32, bf16 = jnp.float32, jnp.bfloat16

    def prow(name, width):                          # (1, width) f32 param row
        r = F32_ROWS[name]
        return p_ref[r:r + 1, 0:width]

    def wblk(name, nrows, width):                   # (nrows, width) bf16 weight
        r = W_ROWS[name]
        return w_ref[r:r + nrows, 0:width]

    def layer_norm(x, gname, bname):
        # single-pass stats: two independent reductions, no serial dependency
        inv_n = 1.0 / HIDDEN
        s1 = jnp.sum(x, axis=-1, keepdims=True)
        s2 = jnp.sum(x * x, axis=-1, keepdims=True)
        mean = s1 * inv_n
        var = s2 * inv_n - mean * mean
        return (x - mean) * jax.lax.rsqrt(var + LN_EPS) * prow(gname, HIDDEN) \
            + prow(bname, HIDDEN)

    emb = p_ref[F32_ROWS['emb']:F32_ROWS['emb'] + BS, 0:HIDDEN]       # (BS, H)
    det = p_ref[F32_ROWS['det']:F32_ROWS['det'] + BS, 0:HIDDEN]       # (BS, H)
    abias = p_ref[F32_ROWS['abias']:F32_ROWS['abias'] + BS, 0:BS]     # (BS, BS)

    # BERT embedding LayerNorm.
    x = layer_norm(emb, 'emb_ln_g', 'emb_ln_b')                       # (BS, H) f32

    for l in range(NUM_LAYERS):                                       # static unroll
        x_bf = x.astype(bf16)                                         # hoisted cast
        attn = None
        for h in range(NUM_HEADS):
            # Per-head projections (scale already folded into wq / bq).
            q = jnp.dot(x_bf, wblk(f'wq_{l}_{h}', HIDDEN, HEAD_DIM),
                        preferred_element_type=f32) + prow(f'bq_{l}_{h}', HEAD_DIM)
            k = jnp.dot(x_bf, wblk(f'wk_{l}_{h}', HIDDEN, HEAD_DIM),
                        preferred_element_type=f32) + prow(f'bk_{l}_{h}', HEAD_DIM)
            v = jnp.dot(x_bf, wblk(f'wv_{l}_{h}', HIDDEN, HEAD_DIM),
                        preferred_element_type=f32) + prow(f'bv_{l}_{h}', HEAD_DIM)

            # Scores over ALL batch rows at once; block-diagonal bias keeps
            # batches independent and applies the attention_mask on keys.
            s = jax.lax.dot_general(q.astype(bf16), k.astype(bf16),
                                    (((1,), (1,)), ((), ())),
                                    preferred_element_type=f32)       # (BS, BS)
            s = s + abias
            s = s - jnp.max(s, axis=-1, keepdims=True)
            p = jnp.exp(s)
            p = p * pl.reciprocal(jnp.sum(p, axis=-1, keepdims=True), approx=True)

            ctx = jnp.dot(p.astype(bf16), v.astype(bf16),
                          preferred_element_type=f32)                 # (BS, Dh)
            # Accumulate head directly into the output projection (no concat).
            term = jnp.dot(ctx.astype(bf16),
                           wblk(f'wo_{l}_{h}', HEAD_DIM, HIDDEN),
                           preferred_element_type=f32)                # (BS, H)
            attn = term if attn is None else attn + term

        attn = attn + prow(f'bo_{l}', HIDDEN)
        x = layer_norm(attn + x, f'ln1_g_{l}', f'ln1_b_{l}')

        # ---- FFN + add & norm ----
        inter = jnp.dot(x.astype(bf16), wblk(f'wi_{l}', HIDDEN, INTERMEDIATE),
                        preferred_element_type=f32) + prow(f'bi_{l}', INTERMEDIATE)
        # TODO(synk): HF BERT default act is exact erf-GELU; tanh approximation used here.
        inter = 0.5 * inter * (1.0 + jnp.tanh(
            0.7978845608028654 * (inter + 0.044715 * inter * inter * inter)))
        ffn = jnp.dot(inter.astype(bf16), wblk(f'wf_{l}', INTERMEDIATE, HIDDEN),
                      preferred_element_type=f32) + prow(f'bf_{l}', HIDDEN)
        x = layer_norm(ffn + x, f'ln2_g_{l}', f'ln2_b_{l}')

    # hidden_states = last_hidden_state + detect_hidden_states
    hidden = x + det
    # dense_layer -> padded vocab logits; 128-lane dense store.
    out_ref[...] = jnp.dot(hidden.astype(bf16), wblk('dense_w', HIDDEN, PAD_W),
                           preferred_element_type=f32) + prow('dense_b', PAD_W)


def _full_spec(shape):
    """Whole-array block (single grid step)."""
    nd = len(shape)
    return pl.BlockSpec(shape, lambda *_: (0,) * nd)


# ------------------------------ model forward ---------------------------------
def correction_network_forward(token_type_ids, attention_mask,
                               word_embeddings, detect_hidden_states, params):
    B, S, H = word_embeddings.shape

    # BERT embeddings: inputs_embeds + position + token_type (gathers in JAX).
    pos = params['position_embeddings'][:S]                          # (S, H)
    tok = params['token_type_embeddings'][token_type_ids]            # (B, S, H)
    emb = (word_embeddings + pos[None, :, :] + tok).reshape(B * S, H)
    det = detect_hidden_states.reshape(B * S, H)

    # Precomputed block-diagonal additive attention bias (wrapper-side).
    bidx = jnp.repeat(jnp.arange(B), S)                               # (BS,)
    key_ok = attention_mask.reshape(B * S) > 0
    valid = (bidx[:, None] == bidx[None, :]) & key_ok[None, :]
    abias = jnp.where(valid, 0.0, NEG_INF).astype(jnp.float32)        # (BS, BS)

    # Assemble the runtime rows and concatenate with the static param rows
    # -> exactly 2 input operands (1 f32 slab + 1 bf16 weight slab).
    rt = jnp.zeros((VEC_BASE, PAD_W), jnp.float32)
    rt = rt.at[F32_ROWS['emb']:F32_ROWS['emb'] + B * S, :H].set(emb)
    rt = rt.at[F32_ROWS['det']:F32_ROWS['det'] + B * S, :H].set(det)
    rt = rt.at[F32_ROWS['abias']:F32_ROWS['abias'] + B * S, :B * S].set(abias)
    actp = jnp.concatenate([rt, params['f32_tail']], axis=0)          # (F32_TOTAL, 128)

    logits_pad = pl.pallas_call(
        _fused_forward_kernel,
        out_shape=jax.ShapeDtypeStruct((B * S, PAD_W), jnp.float32),
        grid=(1,),
        in_specs=[_full_spec(actp.shape), _full_spec(params['w_slab'].shape)],
        out_specs=_full_spec((B * S, PAD_W)),
        compiler_params=pltpu.CompilerParams(
            dimension_semantics=("arbitrary",)),
    )(actp, params['w_slab'])

    # Drop the zero-padded vocab columns.
    return logits_pad[:, :VOCAB].reshape(B, S, VOCAB)


# ------------------------------ parameter init --------------------------------
def init_params(key):
    keys = iter(jax.random.split(key, 32))

    def normal(shape, scale=0.02):
        return scale * jax.random.normal(next(keys), shape, jnp.float32)

    f32_tail = jnp.zeros((F32_TOTAL - VEC_BASE, PAD_W), jnp.float32)
    w_slab = jnp.zeros((W_TOTAL, PAD_W), jnp.float32)

    def set_vec(name, vec):
        nonlocal f32_tail
        r = F32_ROWS[name] - VEC_BASE
        f32_tail = f32_tail.at[r, :vec.shape[0]].set(vec)

    def set_w(name, mat):
        nonlocal w_slab
        r = W_ROWS[name]
        w_slab = w_slab.at[r:r + mat.shape[0], :mat.shape[1]].set(mat)

    set_vec('emb_ln_g', jnp.ones((HIDDEN,), jnp.float32))
    set_vec('emb_ln_b', jnp.zeros((HIDDEN,), jnp.float32))

    for l in range(NUM_LAYERS):
        wq, wk, wv = normal((HIDDEN, HIDDEN)), normal((HIDDEN, HIDDEN)), normal((HIDDEN, HIDDEN))
        bq = jnp.zeros((HIDDEN,), jnp.float32)
        bk = jnp.zeros((HIDDEN,), jnp.float32)
        bv = jnp.zeros((HIDDEN,), jnp.float32)
        wo = normal((HIDDEN, HIDDEN))
        wi, wf_ = normal((HIDDEN, INTERMEDIATE)), normal((INTERMEDIATE, HIDDEN))
        for h in range(NUM_HEADS):
            c = h * HEAD_DIM
            # fold 1/sqrt(head_dim) into the Q projection
            set_w(f'wq_{l}_{h}', wq[:, c:c + HEAD_DIM] * _ATT_SCALE)
            set_vec(f'bq_{l}_{h}', bq[c:c + HEAD_DIM] * _ATT_SCALE)
            set_w(f'wk_{l}_{h}', wk[:, c:c + HEAD_DIM])
            set_vec(f'bk_{l}_{h}', bk[c:c + HEAD_DIM])
            set_w(f'wv_{l}_{h}', wv[:, c:c + HEAD_DIM])
            set_vec(f'bv_{l}_{h}', bv[c:c + HEAD_DIM])
            set_w(f'wo_{l}_{h}', wo[c:c + HEAD_DIM, :])
        set_vec(f'bo_{l}', jnp.zeros((HIDDEN,), jnp.float32))
        set_vec(f'ln1_g_{l}', jnp.ones((HIDDEN,), jnp.float32))
        set_vec(f'ln1_b_{l}', jnp.zeros((HIDDEN,), jnp.float32))
        set_w(f'wi_{l}', wi)
        set_vec(f'bi_{l}', jnp.zeros((INTERMEDIATE,), jnp.float32))
        set_w(f'wf_{l}', wf_)
        set_vec(f'bf_{l}', jnp.zeros((HIDDEN,), jnp.float32))
        set_vec(f'ln2_g_{l}', jnp.ones((HIDDEN,), jnp.float32))
        set_vec(f'ln2_b_{l}', jnp.zeros((HIDDEN,), jnp.float32))

    set_w('dense_w', normal((HIDDEN, VOCAB)))          # lanes VOCAB..127 stay zero
    set_vec('dense_b', jnp.zeros((PAD_W,), jnp.float32))

    return {
        'position_embeddings': normal((MAX_POS, HIDDEN)),
        'token_type_embeddings': normal((TYPE_VOCAB, HIDDEN)),
        'f32_tail': f32_tail,                          # static vector-param rows (f32)
        'w_slab': w_slab.astype(jnp.bfloat16),         # all matmul weights (bf16)
    }


# ----------------------------------- main --------------------------------------
if __name__ == "__main__":
    key = jax.random.PRNGKey(0)
    k_par, k_we, k_det = jax.random.split(key, 3)

    params = init_params(k_par)

    # inputs dict contents (what the tokenizer would produce):
    token_type_ids = jnp.zeros((BATCH, SEQ), jnp.int32)
    attention_mask = jnp.array(
        [[1] * SEQ,
         [1] * (SEQ - 2) + [0, 0]], jnp.int32)                   # second seq padded
    # word_embeddings = word_embedding_table(input_ids)  (synthetic here)
    word_embeddings = 0.02 * jax.random.normal(
        k_we, (BATCH, SEQ, HIDDEN), jnp.float32)
    # detect_hidden_states from the Detection Network (synthetic here)
    detect_hidden_states = 0.02 * jax.random.normal(
        k_det, (BATCH, SEQ, HIDDEN), jnp.float32)

    fwd = jax.jit(lambda tt, am, we, dh:
                  correction_network_forward(tt, am, we, dh, params))
    logits = fwd(token_type_ids, attention_mask, word_embeddings,
                 detect_hidden_states)
    jax.block_until_ready(logits)

    assert logits.shape == (BATCH, SEQ, VOCAB)
    assert logits.dtype == jnp.float32
    assert bool(jnp.all(jnp.isfinite(logits)))
    print("KERNEL_OK")
</pallas_src>

<mosaic_0001>
module attributes {stable_mosaic.version = 11 : i64} {
  func.func @_fused_forward_kernel(%arg0: i32, %arg1: memref<80x128xf32, #tpu.memory_space<vmem>>, %arg2: memref<672x128xbf16, #tpu.memory_space<vmem>>, %arg3: memref<16x128xf32, #tpu.memory_space<vmem>>) attributes {dimension_semantics = [#tpu.dimension_semantics<arbitrary>], iteration_bounds = array<i64: 1>, scalar_prefetch = 0 : i64, scratch_operands = 0 : i64, tpu.core_type = #tpu.core_type<tc>, window_params = [{pipeline_mode = #tpu.pipeline_mode<synchronous>, transform_indices = @transform_0, window_bounds = array<i64: 80, 128>}, {pipeline_mode = #tpu.pipeline_mode<synchronous>, transform_indices = @transform_1, window_bounds = array<i64: 672, 128>}, {pipeline_mode = #tpu.pipeline_mode<synchronous>, transform_indices = @transform_2, window_bounds = array<i64: 16, 128>}]} {
    %c0 = arith.constant 0 : index
    %c0_0 = arith.constant 0 : index
    %0 = vector.load %arg1[%c0, %c0_0] : memref<80x128xf32, #tpu.memory_space<vmem>>, vector<16x32xf32>
    %c16 = arith.constant 16 : index
    %c0_1 = arith.constant 0 : index
    %1 = vector.load %arg1[%c16, %c0_1] : memref<80x128xf32, #tpu.memory_space<vmem>>, vector<16x32xf32>
    %c32 = arith.constant 32 : index
    %c0_2 = arith.constant 0 : index
    %2 = vector.load %arg1[%c32, %c0_2] : memref<80x128xf32, #tpu.memory_space<vmem>>, vector<16x16xf32>
    %cst = arith.constant dense<0.000000e+00> : vector<16xf32>
    %3 = vector.multi_reduction <add>, %0, %cst [1] : vector<16x32xf32> to vector<16xf32>
    %4 = vector.shape_cast %3 : vector<16xf32> to vector<16x1xf32>
    %5 = arith.mulf %0, %0 : vector<16x32xf32>
    %cst_3 = arith.constant dense<0.000000e+00> : vector<16xf32>
    %6 = vector.multi_reduction <add>, %5, %cst_3 [1] : vector<16x32xf32> to vector<16xf32>
    %7 = vector.shape_cast %6 : vector<16xf32> to vector<16x1xf32>
    %cst_4 = arith.constant 3.125000e-02 : f32
    %8 = vector.broadcast %cst_4 : f32 to vector<16x1xf32>
    %9 = arith.mulf %4, %8 : vector<16x1xf32>
    %cst_5 = arith.constant 3.125000e-02 : f32
    %10 = vector.broadcast %cst_5 : f32 to vector<16x1xf32>
    %11 = arith.mulf %7, %10 : vector<16x1xf32>
    %12 = arith.mulf %9, %9 : vector<16x1xf32>
    %13 = arith.subf %11, %12 : vector<16x1xf32>
    %14 = vector.broadcast %9 : vector<16x1xf32> to vector<16x32xf32>
    %15 = arith.subf %0, %14 : vector<16x32xf32>
    %cst_6 = arith.constant 9.99999996E-13 : f32
    %16 = vector.broadcast %cst_6 : f32 to vector<16x1xf32>
    %17 = arith.addf %13, %16 : vector<16x1xf32>
    %18 = math.rsqrt %17 : vector<16x1xf32>
    %19 = vector.broadcast %18 : vector<16x1xf32> to vector<16x32xf32>
    %20 = arith.mulf %15, %19 : vector<16x32xf32>
    %c48 = arith.constant 48 : index
    %c0_7 = arith.constant 0 : index
    %21 = vector.load %arg1[%c48, %c0_7] : memref<80x128xf32, #tpu.memory_space<vmem>>, vector<1x32xf32>
    %22 = vector.broadcast %21 : vector<1x32xf32> to vector<16x32xf32>
    %23 = arith.mulf %20, %22 : vector<16x32xf32>
    %c49 = arith.constant 49 : index
    %c0_8 = arith.constant 0 : index
    %24 = vector.load %arg1[%c49, %c0_8] : memref<80x128xf32, #tpu.memory_space<vmem>>, vector<1x32xf32>
    %25 = vector.broadcast %24 : vector<1x32xf32> to vector<16x32xf32>
    %26 = arith.addf %23, %25 : vector<16x32xf32>
    %27 = arith.truncf %26 : vector<16x32xf32> to vector<16x32xbf16>
    %c0_9 = arith.constant 0 : index
    %c0_10 = arith.constant 0 : index
    %28 = vector.load %arg2[%c0_9, %c0_10] : memref<672x128xbf16, #tpu.memory_space<vmem>>, vector<32x16xbf16>
    %cst_11 = arith.constant dense<0.000000e+00> : vector<16x16xf32>
    %29 = tpu.matmul %27, %28, %cst_11 {dimension_numbers = #tpu.dot_dimension_numbers<[1], [0], [0], [1], [0, 0, 1, 1], [], []>} : vector<16x32xbf16>, vector<32x16xbf16>, vector<16x16xf32> -> vector<16x16xf32>
    %c50 = arith.constant 50 : index
    %c0_12 = arith.constant 0 : index
    %30 = vector.load %arg1[%c50, %c0_12] : memref<80x128xf32, #tpu.memory_space<vmem>>, vector<1x16xf32>
    %31 = vector.broadcast %30 : vector<1x16xf32> to vector<16x16xf32>
    %32 = arith.addf %29, %31 : vector<16x16xf32>
    %c32_13 = arith.constant 32 : index
    %c0_14 = arith.constant 0 : index
    %33 = vector.load %arg2[%c32_13, %c0_14] : memref<672x128xbf16, #tpu.memory_space<vmem>>, vector<32x16xbf16>
    %cst_15 = arith.constant dense<0.000000e+00> : vector<16x16xf32>
    %34 = tpu.matmul %27, %33, %cst_15 {dimension_numbers = #tpu.dot_dimension_numbers<[1], [0], [0], [1], [0, 0, 1, 1], [], []>} : vector<16x32xbf16>, vector<32x16xbf16>, vector<16x16xf32> -> vector<16x16xf32>
    %c51 = arith.constant 51 : index
    %c0_16 = arith.constant 0 : index
    %35 = vector.load %arg1[%c51, %c0_16] : memref<80x128xf32, #tpu.memory_space<vmem>>, vector<1x16xf32>
    %36 = vector.broadcast %35 : vector<1x16xf32> to vector<16x16xf32>
    %37 = arith.addf %34, %36 : vector<16x16xf32>
    %c64 = arith.constant 64 : index
    %c0_17 = arith.constant 0 : index
    %38 = vector.load %arg2[%c64, %c0_17] : memref<672x128xbf16, #tpu.memory_space<vmem>>, vector<32x16xbf16>
    %cst_18 = arith.constant dense<0.000000e+00> : vector<16x16xf32>
    %39 = tpu.matmul %27, %38, %cst_18 {dimension_numbers = #tpu.dot_dimension_numbers<[1], [0], [0], [1], [0, 0, 1, 1], [], []>} : vector<16x32xbf16>, vector<32x16xbf16>, vector<16x16xf32> -> vector<16x16xf32>
    %c52 = arith.constant 52 : index
    %c0_19 = arith.constant 0 : index
    %40 = vector.load %arg1[%c52, %c0_19] : memref<80x128xf32, #tpu.memory_space<vmem>>, vector<1x16xf32>
    %41 = vector.broadcast %40 : vector<1x16xf32> to vector<16x16xf32>
    %42 = arith.addf %39, %41 : vector<16x16xf32>
    %43 = arith.truncf %32 : vector<16x16xf32> to vector<16x16xbf16>
    %44 = arith.truncf %37 : vector<16x16xf32> to vector<16x16xbf16>
    %cst_20 = arith.constant dense<0.000000e+00> : vector<16x16xf32>
    %45 = tpu.matmul %43, %44, %cst_20 {dimension_numbers = #tpu.dot_dimension_numbers<[1], [1], [0], [0], [0, 0, 1, 0], [], []>} : vector<16x16xbf16>, vector<16x16xbf16>, vector<16x16xf32> -> vector<16x16xf32>
    %46 = arith.addf %45, %2 : vector<16x16xf32>
    %cst_21 = arith.constant dense<0xFF800000> : vector<16xf32>
    %47 = vector.multi_reduction <maximumf>, %46, %cst_21 [1] : vector<16x16xf32> to vector<16xf32>
    %48 = vector.shape_cast %47 : vector<16xf32> to vector<16x1xf32>
    %49 = vector.broadcast %48 : vector<16x1xf32> to vector<16x16xf32>
    %50 = arith.subf %46, %49 : vector<16x16xf32>
    %51 = math.exp %50 : vector<16x16xf32>
    %cst_22 = arith.constant dense<0.000000e+00> : vector<16xf32>
    %52 = vector.multi_reduction <add>, %51, %cst_22 [1] : vector<16x16xf32> to vector<16xf32>
    %53 = vector.shape_cast %52 : vector<16xf32> to vector<16x1xf32>
    %54 = tpu.reciprocal %53 {approx = true} : vector<16x1xf32> -> vector<16x1xf32>
    %55 = vector.broadcast %54 : vector<16x1xf32> to vector<16x16xf32>
    %56 = arith.mulf %51, %55 : vector<16x16xf32>
    %57 = arith.truncf %56 : vector<16x16xf32> to vector<16x16xbf16>
    %58 = arith.truncf %42 : vector<16x16xf32> to vector<16x16xbf16>
    %cst_23 = arith.constant dense<0.000000e+00> : vector<16x16xf32>
    %59 = tpu.matmul %57, %58, %cst_23 {dimension_numbers = #tpu.dot_dimension_numbers<[1], [0], [0], [1], [0, 0, 1, 1], [], []>} : vector<16x16xbf16>, vector<16x16xbf16>, vector<16x16xf32> -> vector<16x16xf32>
    %60 = arith.truncf %59 : vector<16x16xf32> to vector<16x16xbf16>
    %c192 = arith.constant 192 : index
    %c0_24 = arith.constant 0 : index
    %61 = vector.load %arg2[%c192, %c0_24] : memref<672x128xbf16, #tpu.memory_space<vmem>>, vector<16x32xbf16>
    %cst_25 = arith.constant dense<0.000000e+00> : vector<16x32xf32>
    %62 = tpu.matmul %60, %61, %cst_25 {dimension_numbers = #tpu.dot_dimension_numbers<[1], [0], [0], [1], [0, 0, 1, 1], [], []>} : vector<16x16xbf16>, vector<16x32xbf16>, vector<16x32xf32> -> vector<16x32xf32>
    %c96 = arith.constant 96 : index
    %c0_26 = arith.constant 0 : index
    %63 = vector.load %arg2[%c96, %c0_26] : memref<672x128xbf16, #tpu.memory_space<vmem>>, vector<32x16xbf16>
    %cst_27 = arith.constant dense<0.000000e+00> : vector<16x16xf32>
    %64 = tpu.matmul %27, %63, %cst_27 {dimension_numbers = #tpu.dot_dimension_numbers<[1], [0], [0], [1], [0, 0, 1, 1], [], []>} : vector<16x32xbf16>, vector<32x16xbf16>, vector<16x16xf32> -> vector<16x16xf32>
    %c53 = arith.constant 53 : index
    %c0_28 = arith.constant 0 : index
    %65 = vector.load %arg1[%c53, %c0_28] : memref<80x128xf32, #tpu.memory_space<vmem>>, vector<1x16xf32>
    %66 = vector.broadcast %65 : vector<1x16xf32> to vector<16x16xf32>
    %67 = arith.addf %64, %66 : vector<16x16xf32>
    %c128 = arith.constant 128 : index
    %c0_29 = arith.constant 0 : index
    %68 = vector.load %arg2[%c128, %c0_29] : memref<672x128xbf16, #tpu.memory_space<vmem>>, vector<32x16xbf16>
    %cst_30 = arith.constant dense<0.000000e+00> : vector<16x16xf32>
    %69 = tpu.matmul %27, %68, %cst_30 {dimension_numbers = #tpu.dot_dimension_numbers<[1], [0], [0], [1], [0, 0, 1, 1], [], []>} : vector<16x32xbf16>, vector<32x16xbf16>, vector<16x16xf32> -> vector<16x16xf32>
    %c54 = arith.constant 54 : index
    %c0_31 = arith.constant 0 : index
    %70 = vector.load %arg1[%c54, %c0_31] : memref<80x128xf32, #tpu.memory_space<vmem>>, vector<1x16xf32>
    %71 = vector.broadcast %70 : vector<1x16xf32> to vector<16x16xf32>
    %72 = arith.addf %69, %71 : vector<16x16xf32>
    %c160 = arith.constant 160 : index
    %c0_32 = arith.constant 0 : index
    %73 = vector.load %arg2[%c160, %c0_32] : memref<672x128xbf16, #tpu.memory_space<vmem>>, vector<32x16xbf16>
    %cst_33 = arith.constant dense<0.000000e+00> : vector<16x16xf32>
    %74 = tpu.matmul %27, %73, %cst_33 {dimension_numbers = #tpu.dot_dimension_numbers<[1], [0], [0], [1], [0, 0, 1, 1], [], []>} : vector<16x32xbf16>, vector<32x16xbf16>, vector<16x16xf32> -> vector<16x16xf32>
    %c55 = arith.constant 55 : index
    %c0_34 = arith.constant 0 : index
    %75 = vector.load %arg1[%c55, %c0_34] : memref<80x128xf32, #tpu.memory_space<vmem>>, vector<1x16xf32>
    %76 = vector.broadcast %75 : vector<1x16xf32> to vector<16x16xf32>
    %77 = arith.addf %74, %76 : vector<16x16xf32>
    %78 = arith.truncf %67 : vector<16x16xf32> to vector<16x16xbf16>
    %79 = arith.truncf %72 : vector<16x16xf32> to vector<16x16xbf16>
    %cst_35 = arith.constant dense<0.000000e+00> : vector<16x16xf32>
    %80 = tpu.matmul %78, %79, %cst_35 {dimension_numbers = #tpu.dot_dimension_numbers<[1], [1], [0], [0], [0, 0, 1, 0], [], []>} : vector<16x16xbf16>, vector<16x16xbf16>, vector<16x16xf32> -> vector<16x16xf32>
    %81 = arith.addf %80, %2 : vector<16x16xf32>
    %cst_36 = arith.constant dense<0xFF800000> : vector<16xf32>
    %82 = vector.multi_reduction <maximumf>, %81, %cst_36 [1] : vector<16x16xf32> to vector<16xf32>
    %83 = vector.shape_cast %82 : vector<16xf32> to vector<16x1xf32>
    %84 = vector.broadcast %83 : vector<16x1xf32> to vector<16x16xf32>
    %85 = arith.subf %81, %84 : vector<16x16xf32>
    %86 = math.exp %85 : vector<16x16xf32>
    %cst_37 = arith.constant dense<0.000000e+00> : vector<16xf32>
    %87 = vector.multi_reduction <add>, %86, %cst_37 [1] : vector<16x16xf32> to vector<16xf32>
    %88 = vector.shape_cast %87 : vector<16xf32> to vector<16x1xf32>
    %89 = tpu.reciprocal %88 {approx = true} : vector<16x1xf32> -> vector<16x1xf32>
    %90 = vector.broadcast %89 : vector<16x1xf32> to vector<16x16xf32>
    %91 = arith.mulf %86, %90 : vector<16x16xf32>
    %92 = arith.truncf %91 : vector<16x16xf32> to vector<16x16xbf16>
    %93 = arith.truncf %77 : vector<16x16xf32> to vector<16x16xbf16>
    %cst_38 = arith.constant dense<0.000000e+00> : vector<16x16xf32>
    %94 = tpu.matmul %92, %93, %cst_38 {dimension_numbers = #tpu.dot_dimension_numbers<[1], [0], [0], [1], [0, 0, 1, 1], [], []>} : vector<16x16xbf16>, vector<16x16xbf16>, vector<16x16xf32> -> vector<16x16xf32>
    %95 = arith.truncf %94 : vector<16x16xf32> to vector<16x16xbf16>
    %c208 = arith.constant 208 : index
    %c0_39 = arith.constant 0 : index
    %96 = vector.load %arg2[%c208, %c0_39] : memref<672x128xbf16, #tpu.memory_space<vmem>>, vector<16x32xbf16>
    %cst_40 = arith.constant dense<0.000000e+00> : vector<16x32xf32>
    %97 = tpu.matmul %95, %96, %cst_40 {dimension_numbers = #tpu.dot_dimension_numbers<[1], [0], [0], [1], [0, 0, 1, 1], [], []>} : vector<16x16xbf16>, vector<16x32xbf16>, vector<16x32xf32> -> vector<16x32xf32>
    %98 = arith.addf %62, %97 : vector<16x32xf32>
    %c56 = arith.constant 56 : index
    %c0_41 = arith.constant 0 : index
    %99 = vector.load %arg1[%c56, %c0_41] : memref<80x128xf32, #tpu.memory_space<vmem>>, vector<1x32xf32>
    %100 = vector.broadcast %99 : vector<1x32xf32> to vector<16x32xf32>
    %101 = arith.addf %98, %100 : vector<16x32xf32>
    %102 = arith.addf %101, %26 : vector<16x32xf32>
    %cst_42 = arith.constant dense<0.000000e+00> : vector<16xf32>
    %103 = vector.multi_reduction <add>, %102, %cst_42 [1] : vector<16x32xf32> to vector<16xf32>
    %104 = vector.shape_cast %103 : vector<16xf32> to vector<16x1xf32>
    %105 = arith.mulf %102, %102 : vector<16x32xf32>
    %cst_43 = arith.constant dense<0.000000e+00> : vector<16xf32>
    %106 = vector.multi_reduction <add>, %105, %cst_43 [1] : vector<16x32xf32> to vector<16xf32>
    %107 = vector.shape_cast %106 : vector<16xf32> to vector<16x1xf32>
    %cst_44 = arith.constant 3.125000e-02 : f32
    %108 = vector.broadcast %cst_44 : f32 to vector<16x1xf32>
    %109 = arith.mulf %104, %108 : vector<16x1xf32>
    %cst_45 = arith.constant 3.125000e-02 : f32
    %110 = vector.broadcast %cst_45 : f32 to vector<16x1xf32>
    %111 = arith.mulf %107, %110 : vector<16x1xf32>
    %112 = arith.mulf %109, %109 : vector<16x1xf32>
    %113 = arith.subf %111, %112 : vector<16x1xf32>
    %114 = vector.broadcast %109 : vector<16x1xf32> to vector<16x32xf32>
    %115 = arith.subf %102, %114 : vector<16x32xf32>
    %cst_46 = arith.constant 9.99999996E-13 : f32
    %116 = vector.broadcast %cst_46 : f32 to vector<16x1xf32>
    %117 = arith.addf %113, %116 : vector<16x1xf32>
    %118 = math.rsqrt %117 : vector<16x1xf32>
    %119 = vector.broadcast %118 : vector<16x1xf32> to vector<16x32xf32>
    %120 = arith.mulf %115, %119 : vector<16x32xf32>
    %c57 = arith.constant 57 : index
    %c0_47 = arith.constant 0 : index
    %121 = vector.load %arg1[%c57, %c0_47] : memref<80x128xf32, #tpu.memory_space<vmem>>, vector<1x32xf32>
    %122 = vector.broadcast %121 : vector<1x32xf32> to vector<16x32xf32>
    %123 = arith.mulf %120, %122 : vector<16x32xf32>
    %c58 = arith.constant 58 : index
    %c0_48 = arith.constant 0 : index
    %124 = vector.load %arg1[%c58, %c0_48] : memref<80x128xf32, #tpu.memory_space<vmem>>, vector<1x32xf32>
    %125 = vector.broadcast %124 : vector<1x32xf32> to vector<16x32xf32>
    %126 = arith.addf %123, %125 : vector<16x32xf32>
    %127 = arith.truncf %126 : vector<16x32xf32> to vector<16x32xbf16>
    %c224 = arith.constant 224 : index
    %c0_49 = arith.constant 0 : index
    %128 = vector.load %arg2[%c224, %c0_49] : memref<672x128xbf16, #tpu.memory_space<vmem>>, vector<32x64xbf16>
    %cst_50 = arith.constant dense<0.000000e+00> : vector<16x64xf32>
    %129 = tpu.matmul %127, %128, %cst_50 {dimension_numbers = #tpu.dot_dimension_numbers<[1], [0], [0], [1], [0, 0, 1, 1], [], []>} : vector<16x32xbf16>, vector<32x64xbf16>, vector<16x64xf32> -> vector<16x64xf32>
    %c59 = arith.constant 59 : index
    %c0_51 = arith.constant 0 : index
    %130 = vector.load %arg1[%c59, %c0_51] : memref<80x128xf32, #tpu.memory_space<vmem>>, vector<1x64xf32>
    %131 = vector.broadcast %130 : vector<1x64xf32> to vector<16x64xf32>
    %132 = arith.addf %129, %131 : vector<16x64xf32>
    %cst_52 = arith.constant 5.000000e-01 : f32
    %133 = vector.broadcast %cst_52 : f32 to vector<16x64xf32>
    %134 = arith.mulf %133, %132 : vector<16x64xf32>
    %cst_53 = arith.constant 4.471500e-02 : f32
    %135 = vector.broadcast %cst_53 : f32 to vector<16x64xf32>
    %136 = arith.mulf %135, %132 : vector<16x64xf32>
    %137 = arith.mulf %136, %132 : vector<16x64xf32>
    %138 = arith.mulf %137, %132 : vector<16x64xf32>
    %139 = arith.addf %132, %138 : vector<16x64xf32>
    %cst_54 = arith.constant 0.797884583 : f32
    %140 = vector.broadcast %cst_54 : f32 to vector<16x64xf32>
    %141 = arith.mulf %140, %139 : vector<16x64xf32>
    %142 = math.tanh %141 : vector<16x64xf32>
    %cst_55 = arith.constant 1.000000e+00 : f32
    %143 = vector.broadcast %cst_55 : f32 to vector<16x64xf32>
    %144 = arith.addf %143, %142 : vector<16x64xf32>
    %145 = arith.mulf %134, %144 : vector<16x64xf32>
    %146 = arith.truncf %145 : vector<16x64xf32> to vector<16x64xbf16>
    %c256 = arith.constant 256 : index
    %c0_56 = arith.constant 0 : index
    %147 = vector.load %arg2[%c256, %c0_56] : memref<672x128xbf16, #tpu.memory_space<vmem>>, vector<64x32xbf16>
    %cst_57 = arith.constant dense<0.000000e+00> : vector<16x32xf32>
    %148 = tpu.matmul %146, %147, %cst_57 {dimension_numbers = #tpu.dot_dimension_numbers<[1], [0], [0], [1], [0, 0, 1, 1], [], []>} : vector<16x64xbf16>, vector<64x32xbf16>, vector<16x32xf32> -> vector<16x32xf32>
    %c60 = arith.constant 60 : index
    %c0_58 = arith.constant 0 : index
    %149 = vector.load %arg1[%c60, %c0_58] : memref<80x128xf32, #tpu.memory_space<vmem>>, vector<1x32xf32>
    %150 = vector.broadcast %149 : vector<1x32xf32> to vector<16x32xf32>
    %151 = arith.addf %148, %150 : vector<16x32xf32>
    %152 = arith.addf %151, %126 : vector<16x32xf32>
    %cst_59 = arith.constant dense<0.000000e+00> : vector<16xf32>
    %153 = vector.multi_reduction <add>, %152, %cst_59 [1] : vector<16x32xf32> to vector<16xf32>
    %154 = vector.shape_cast %153 : vector<16xf32> to vector<16x1xf32>
    %155 = arith.mulf %152, %152 : vector<16x32xf32>
    %cst_60 = arith.constant dense<0.000000e+00> : vector<16xf32>
    %156 = vector.multi_reduction <add>, %155, %cst_60 [1] : vector<16x32xf32> to vector<16xf32>
    %157 = vector.shape_cast %156 : vector<16xf32> to vector<16x1xf32>
    %cst_61 = arith.constant 3.125000e-02 : f32
    %158 = vector.broadcast %cst_61 : f32 to vector<16x1xf32>
    %159 = arith.mulf %154, %158 : vector<16x1xf32>
    %cst_62 = arith.constant 3.125000e-02 : f32
    %160 = vector.broadcast %cst_62 : f32 to vector<16x1xf32>
    %161 = arith.mulf %157, %160 : vector<16x1xf32>
    %162 = arith.mulf %159, %159 : vector<16x1xf32>
    %163 = arith.subf %161, %162 : vector<16x1xf32>
    %164 = vector.broadcast %159 : vector<16x1xf32> to vector<16x32xf32>
    %165 = arith.subf %152, %164 : vector<16x32xf32>
    %cst_63 = arith.constant 9.99999996E-13 : f32
    %166 = vector.broadcast %cst_63 : f32 to vector<16x1xf32>
    %167 = arith.addf %163, %166 : vector<16x1xf32>
    %168 = math.rsqrt %167 : vector<16x1xf32>
    %169 = vector.broadcast %168 : vector<16x1xf32> to vector<16x32xf32>
    %170 = arith.mulf %165, %169 : vector<16x32xf32>
    %c61 = arith.constant 61 : index
    %c0_64 = arith.constant 0 : index
    %171 = vector.load %arg1[%c61, %c0_64] : memref<80x128xf32, #tpu.memory_space<vmem>>, vector<1x32xf32>
    %172 = vector.broadcast %171 : vector<1x32xf32> to vector<16x32xf32>
    %173 = arith.mulf %170, %172 : vector<16x32xf32>
    %c62 = arith.constant 62 : index
    %c0_65 = arith.constant 0 : index
    %174 = vector.load %arg1[%c62, %c0_65] : memref<80x128xf32, #tpu.memory_space<vmem>>, vector<1x32xf32>
    %175 = vector.broadcast %174 : vector<1x32xf32> to vector<16x32xf32>
    %176 = arith.addf %173, %175 : vector<16x32xf32>
    %177 = arith.truncf %176 : vector<16x32xf32> to vector<16x32xbf16>
    %c320 = arith.constant 320 : index
    %c0_66 = arith.constant 0 : index
    %178 = vector.load %arg2[%c320, %c0_66] : memref<672x128xbf16, #tpu.memory_space<vmem>>, vector<32x16xbf16>
    %cst_67 = arith.constant dense<0.000000e+00> : vector<16x16xf32>
    %179 = tpu.matmul %177, %178, %cst_67 {dimension_numbers = #tpu.dot_dimension_numbers<[1], [0], [0], [1], [0, 0, 1, 1], [], []>} : vector<16x32xbf16>, vector<32x16xbf16>, vector<16x16xf32> -> vector<16x16xf32>
    %c63 = arith.constant 63 : index
    %c0_68 = arith.constant 0 : index
    %180 = vector.load %arg1[%c63, %c0_68] : memref<80x128xf32, #tpu.memory_space<vmem>>, vector<1x16xf32>
    %181 = vector.broadcast %180 : vector<1x16xf32> to vector<16x16xf32>
    %182 = arith.addf %179, %181 : vector<16x16xf32>
    %c352 = arith.constant 352 : index
    %c0_69 = arith.constant 0 : index
    %183 = vector.load %arg2[%c352, %c0_69] : memref<672x128xbf16, #tpu.memory_space<vmem>>, vector<32x16xbf16>
    %cst_70 = arith.constant dense<0.000000e+00> : vector<16x16xf32>
    %184 = tpu.matmul %177, %183, %cst_70 {dimension_numbers = #tpu.dot_dimension_numbers<[1], [0], [0], [1], [0, 0, 1, 1], [], []>} : vector<16x32xbf16>, vector<32x16xbf16>, vector<16x16xf32> -> vector<16x16xf32>
    %c64_71 = arith.constant 64 : index
    %c0_72 = arith.constant 0 : index
    %185 = vector.load %arg1[%c64_71, %c0_72] : memref<80x128xf32, #tpu.memory_space<vmem>>, vector<1x16xf32>
    %186 = vector.broadcast %185 : vector<1x16xf32> to vector<16x16xf32>
    %187 = arith.addf %184, %186 : vector<16x16xf32>
    %c384 = arith.constant 384 : index
    %c0_73 = arith.constant 0 : index
    %188 = vector.load %arg2[%c384, %c0_73] : memref<672x128xbf16, #tpu.memory_space<vmem>>, vector<32x16xbf16>
    %cst_74 = arith.constant dense<0.000000e+00> : vector<16x16xf32>
    %189 = tpu.matmul %177, %188, %cst_74 {dimension_numbers = #tpu.dot_dimension_numbers<[1], [0], [0], [1], [0, 0, 1, 1], [], []>} : vector<16x32xbf16>, vector<32x16xbf16>, vector<16x16xf32> -> vector<16x16xf32>
    %c65 = arith.constant 65 : index
    %c0_75 = arith.constant 0 : index
    %190 = vector.load %arg1[%c65, %c0_75] : memref<80x128xf32, #tpu.memory_space<vmem>>, vector<1x16xf32>
    %191 = vector.broadcast %190 : vector<1x16xf32> to vector<16x16xf32>
    %192 = arith.addf %189, %191 : vector<16x16xf32>
    %193 = arith.truncf %182 : vector<16x16xf32> to vector<16x16xbf16>
    %194 = arith.truncf %187 : vector<16x16xf32> to vector<16x16xbf16>
    %cst_76 = arith.constant dense<0.000000e+00> : vector<16x16xf32>
    %195 = tpu.matmul %193, %194, %cst_76 {dimension_numbers = #tpu.dot_dimension_numbers<[1], [1], [0], [0], [0, 0, 1, 0], [], []>} : vector<16x16xbf16>, vector<16x16xbf16>, vector<16x16xf32> -> vector<16x16xf32>
    %196 = arith.addf %195, %2 : vector<16x16xf32>
    %cst_77 = arith.constant dense<0xFF800000> : vector<16xf32>
    %197 = vector.multi_reduction <maximumf>, %196, %cst_77 [1] : vector<16x16xf32> to vector<16xf32>
    %198 = vector.shape_cast %197 : vector<16xf32> to vector<16x1xf32>
    %199 = vector.broadcast %198 : vector<16x1xf32> to vector<16x16xf32>
    %200 = arith.subf %196, %199 : vector<16x16xf32>
    %201 = math.exp %200 : vector<16x16xf32>
    %cst_78 = arith.constant dense<0.000000e+00> : vector<16xf32>
    %202 = vector.multi_reduction <add>, %201, %cst_78 [1] : vector<16x16xf32> to vector<16xf32>
    %203 = vector.shape_cast %202 : vector<16xf32> to vector<16x1xf32>
    %204 = tpu.reciprocal %203 {approx = true} : vector<16x1xf32> -> vector<16x1xf32>
    %205 = vector.broadcast %204 : vector<16x1xf32> to vector<16x16xf32>
    %206 = arith.mulf %201, %205 : vector<16x16xf32>
    %207 = arith.truncf %206 : vector<16x16xf32> to vector<16x16xbf16>
    %208 = arith.truncf %192 : vector<16x16xf32> to vector<16x16xbf16>
    %cst_79 = arith.constant dense<0.000000e+00> : vector<16x16xf32>
    %209 = tpu.matmul %207, %208, %cst_79 {dimension_numbers = #tpu.dot_dimension_numbers<[1], [0], [0], [1], [0, 0, 1, 1], [], []>} : vector<16x16xbf16>, vector<16x16xbf16>, vector<16x16xf32> -> vector<16x16xf32>
    %210 = arith.truncf %209 : vector<16x16xf32> to vector<16x16xbf16>
    %c512 = arith.constant 512 : index
    %c0_80 = arith.constant 0 : index
    %211 = vector.load %arg2[%c512, %c0_80] : memref<672x128xbf16, #tpu.memory_space<vmem>>, vector<16x32xbf16>
    %cst_81 = arith.constant dense<0.000000e+00> : vector<16x32xf32>
    %212 = tpu.matmul %210, %211, %cst_81 {dimension_numbers = #tpu.dot_dimension_numbers<[1], [0], [0], [1], [0, 0, 1, 1], [], []>} : vector<16x16xbf16>, vector<16x32xbf16>, vector<16x32xf32> -> vector<16x32xf32>
    %c416 = arith.constant 416 : index
    %c0_82 = arith.constant 0 : index
    %213 = vector.load %arg2[%c416, %c0_82] : memref<672x128xbf16, #tpu.memory_space<vmem>>, vector<32x16xbf16>
    %cst_83 = arith.constant dense<0.000000e+00> : vector<16x16xf32>
    %214 = tpu.matmul %177, %213, %cst_83 {dimension_numbers = #tpu.dot_dimension_numbers<[1], [0], [0], [1], [0, 0, 1, 1], [], []>} : vector<16x32xbf16>, vector<32x16xbf16>, vector<16x16xf32> -> vector<16x16xf32>
    %c66 = arith.constant 66 : index
    %c0_84 = arith.constant 0 : index
    %215 = vector.load %arg1[%c66, %c0_84] : memref<80x128xf32, #tpu.memory_space<vmem>>, vector<1x16xf32>
    %216 = vector.broadcast %215 : vector<1x16xf32> to vector<16x16xf32>
    %217 = arith.addf %214, %216 : vector<16x16xf32>
    %c448 = arith.constant 448 : index
    %c0_85 = arith.constant 0 : index
    %218 = vector.load %arg2[%c448, %c0_85] : memref<672x128xbf16, #tpu.memory_space<vmem>>, vector<32x16xbf16>
    %cst_86 = arith.constant dense<0.000000e+00> : vector<16x16xf32>
    %219 = tpu.matmul %177, %218, %cst_86 {dimension_numbers = #tpu.dot_dimension_numbers<[1], [0], [0], [1], [0, 0, 1, 1], [], []>} : vector<16x32xbf16>, vector<32x16xbf16>, vector<16x16xf32> -> vector<16x16xf32>
    %c67 = arith.constant 67 : index
    %c0_87 = arith.constant 0 : index
    %220 = vector.load %arg1[%c67, %c0_87] : memref<80x128xf32, #tpu.memory_space<vmem>>, vector<1x16xf32>
    %221 = vector.broadcast %220 : vector<1x16xf32> to vector<16x16xf32>
    %222 = arith.addf %219, %221 : vector<16x16xf32>
    %c480 = arith.constant 480 : index
    %c0_88 = arith.constant 0 : index
    %223 = vector.load %arg2[%c480, %c0_88] : memref<672x128xbf16, #tpu.memory_space<vmem>>, vector<32x16xbf16>
    %cst_89 = arith.constant dense<0.000000e+00> : vector<16x16xf32>
    %224 = tpu.matmul %177, %223, %cst_89 {dimension_numbers = #tpu.dot_dimension_numbers<[1], [0], [0], [1], [0, 0, 1, 1], [], []>} : vector<16x32xbf16>, vector<32x16xbf16>, vector<16x16xf32> -> vector<16x16xf32>
    %c68 = arith.constant 68 : index
    %c0_90 = arith.constant 0 : index
    %225 = vector.load %arg1[%c68, %c0_90] : memref<80x128xf32, #tpu.memory_space<vmem>>, vector<1x16xf32>
    %226 = vector.broadcast %225 : vector<1x16xf32> to vector<16x16xf32>
    %227 = arith.addf %224, %226 : vector<16x16xf32>
    %228 = arith.truncf %217 : vector<16x16xf32> to vector<16x16xbf16>
    %229 = arith.truncf %222 : vector<16x16xf32> to vector<16x16xbf16>
    %cst_91 = arith.constant dense<0.000000e+00> : vector<16x16xf32>
    %230 = tpu.matmul %228, %229, %cst_91 {dimension_numbers = #tpu.dot_dimension_numbers<[1], [1], [0], [0], [0, 0, 1, 0], [], []>} : vector<16x16xbf16>, vector<16x16xbf16>, vector<16x16xf32> -> vector<16x16xf32>
    %231 = arith.addf %230, %2 : vector<16x16xf32>
    %cst_92 = arith.constant dense<0xFF800000> : vector<16xf32>
    %232 = vector.multi_reduction <maximumf>, %231, %cst_92 [1] : vector<16x16xf32> to vector<16xf32>
    %233 = vector.shape_cast %232 : vector<16xf32> to vector<16x1xf32>
    %234 = vector.broadcast %233 : vector<16x1xf32> to vector<16x16xf32>
    %235 = arith.subf %231, %234 : vector<16x16xf32>
    %236 = math.exp %235 : vector<16x16xf32>
    %cst_93 = arith.constant dense<0.000000e+00> : vector<16xf32>
    %237 = vector.multi_reduction <add>, %236, %cst_93 [1] : vector<16x16xf32> to vector<16xf32>
    %238 = vector.shape_cast %237 : vector<16xf32> to vector<16x1xf32>
    %239 = tpu.reciprocal %238 {approx = true} : vector<16x1xf32> -> vector<16x1xf32>
    %240 = vector.broadcast %239 : vector<16x1xf32> to vector<16x16xf32>
    %241 = arith.mulf %236, %240 : vector<16x16xf32>
    %242 = arith.truncf %241 : vector<16x16xf32> to vector<16x16xbf16>
    %243 = arith.truncf %227 : vector<16x16xf32> to vector<16x16xbf16>
    %cst_94 = arith.constant dense<0.000000e+00> : vector<16x16xf32>
    %244 = tpu.matmul %242, %243, %cst_94 {dimension_numbers = #tpu.dot_dimension_numbers<[1], [0], [0], [1], [0, 0, 1, 1], [], []>} : vector<16x16xbf16>, vector<16x16xbf16>, vector<16x16xf32> -> vector<16x16xf32>
    %245 = arith.truncf %244 : vector<16x16xf32> to vector<16x16xbf16>
    %c528 = arith.constant 528 : index
    %c0_95 = arith.constant 0 : index
    %246 = vector.load %arg2[%c528, %c0_95] : memref<672x128xbf16, #tpu.memory_space<vmem>>, vector<16x32xbf16>
    %cst_96 = arith.constant dense<0.000000e+00> : vector<16x32xf32>
    %247 = tpu.matmul %245, %246, %cst_96 {dimension_numbers = #tpu.dot_dimension_numbers<[1], [0], [0], [1], [0, 0, 1, 1], [], []>} : vector<16x16xbf16>, vector<16x32xbf16>, vector<16x32xf32> -> vector<16x32xf32>
    %248 = arith.addf %212, %247 : vector<16x32xf32>
    %c69 = arith.constant 69 : index
    %c0_97 = arith.constant 0 : index
    %249 = vector.load %arg1[%c69, %c0_97] : memref<80x128xf32, #tpu.memory_space<vmem>>, vector<1x32xf32>
    %250 = vector.broadcast %249 : vector<1x32xf32> to vector<16x32xf32>
    %251 = arith.addf %248, %250 : vector<16x32xf32>
    %252 = arith.addf %251, %176 : vector<16x32xf32>
    %cst_98 = arith.constant dense<0.000000e+00> : vector<16xf32>
    %253 = vector.multi_reduction <add>, %252, %cst_98 [1] : vector<16x32xf32> to vector<16xf32>
    %254 = vector.shape_cast %253 : vector<16xf32> to vector<16x1xf32>
    %255 = arith.mulf %252, %252 : vector<16x32xf32>
    %cst_99 = arith.constant dense<0.000000e+00> : vector<16xf32>
    %256 = vector.multi_reduction <add>, %255, %cst_99 [1] : vector<16x32xf32> to vector<16xf32>
    %257 = vector.shape_cast %256 : vector<16xf32> to vector<16x1xf32>
    %cst_100 = arith.constant 3.125000e-02 : f32
    %258 = vector.broadcast %cst_100 : f32 to vector<16x1xf32>
    %259 = arith.mulf %254, %258 : vector<16x1xf32>
    %cst_101 = arith.constant 3.125000e-02 : f32
    %260 = vector.broadcast %cst_101 : f32 to vector<16x1xf32>
    %261 = arith.mulf %257, %260 : vector<16x1xf32>
    %262 = arith.mulf %259, %259 : vector<16x1xf32>
    %263 = arith.subf %261, %262 : vector<16x1xf32>
    %264 = vector.broadcast %259 : vector<16x1xf32> to vector<16x32xf32>
    %265 = arith.subf %252, %264 : vector<16x32xf32>
    %cst_102 = arith.constant 9.99999996E-13 : f32
    %266 = vector.broadcast %cst_102 : f32 to vector<16x1xf32>
    %267 = arith.addf %263, %266 : vector<16x1xf32>
    %268 = math.rsqrt %267 : vector<16x1xf32>
    %269 = vector.broadcast %268 : vector<16x1xf32> to vector<16x32xf32>
    %270 = arith.mulf %265, %269 : vector<16x32xf32>
    %c70 = arith.constant 70 : index
    %c0_103 = arith.constant 0 : index
    %271 = vector.load %arg1[%c70, %c0_103] : memref<80x128xf32, #tpu.memory_space<vmem>>, vector<1x32xf32>
    %272 = vector.broadcast %271 : vector<1x32xf32> to vector<16x32xf32>
    %273 = arith.mulf %270, %272 : vector<16x32xf32>
    %c71 = arith.constant 71 : index
    %c0_104 = arith.constant 0 : index
    %274 = vector.load %arg1[%c71, %c0_104] : memref<80x128xf32, #tpu.memory_space<vmem>>, vector<1x32xf32>
    %275 = vector.broadcast %274 : vector<1x32xf32> to vector<16x32xf32>
    %276 = arith.addf %273, %275 : vector<16x32xf32>
    %277 = arith.truncf %276 : vector<16x32xf32> to vector<16x32xbf16>
    %c544 = arith.constant 544 : index
    %c0_105 = arith.constant 0 : index
    %278 = vector.load %arg2[%c544, %c0_105] : memref<672x128xbf16, #tpu.memory_space<vmem>>, vector<32x64xbf16>
    %cst_106 = arith.constant dense<0.000000e+00> : vector<16x64xf32>
    %279 = tpu.matmul %277, %278, %cst_106 {dimension_numbers = #tpu.dot_dimension_numbers<[1], [0], [0], [1], [0, 0, 1, 1], [], []>} : vector<16x32xbf16>, vector<32x64xbf16>, vector<16x64xf32> -> vector<16x64xf32>
    %c72 = arith.constant 72 : index
    %c0_107 = arith.constant 0 : index
    %280 = vector.load %arg1[%c72, %c0_107] : memref<80x128xf32, #tpu.memory_space<vmem>>, vector<1x64xf32>
    %281 = vector.broadcast %280 : vector<1x64xf32> to vector<16x64xf32>
    %282 = arith.addf %279, %281 : vector<16x64xf32>
    %cst_108 = arith.constant 5.000000e-01 : f32
    %283 = vector.broadcast %cst_108 : f32 to vector<16x64xf32>
    %284 = arith.mulf %283, %282 : vector<16x64xf32>
    %cst_109 = arith.constant 4.471500e-02 : f32
    %285 = vector.broadcast %cst_109 : f32 to vector<16x64xf32>
    %286 = arith.mulf %285, %282 : vector<16x64xf32>
    %287 = arith.mulf %286, %282 : vector<16x64xf32>
    %288 = arith.mulf %287, %282 : vector<16x64xf32>
    %289 = arith.addf %282, %288 : vector<16x64xf32>
    %cst_110 = arith.constant 0.797884583 : f32
    %290 = vector.broadcast %cst_110 : f32 to vector<16x64xf32>
    %291 = arith.mulf %290, %289 : vector<16x64xf32>
    %292 = math.tanh %291 : vector<16x64xf32>
    %cst_111 = arith.constant 1.000000e+00 : f32
    %293 = vector.broadcast %cst_111 : f32 to vector<16x64xf32>
    %294 = arith.addf %293, %292 : vector<16x64xf32>
    %295 = arith.mulf %284, %294 : vector<16x64xf32>
    %296 = arith.truncf %295 : vector<16x64xf32> to vector<16x64xbf16>
    %c576 = arith.constant 576 : index
    %c0_112 = arith.constant 0 : index
    %297 = vector.load %arg2[%c576, %c0_112] : memref<672x128xbf16, #tpu.memory_space<vmem>>, vector<64x32xbf16>
    %cst_113 = arith.constant dense<0.000000e+00> : vector<16x32xf32>
    %298 = tpu.matmul %296, %297, %cst_113 {dimension_numbers = #tpu.dot_dimension_numbers<[1], [0], [0], [1], [0, 0, 1, 1], [], []>} : vector<16x64xbf16>, vector<64x32xbf16>, vector<16x32xf32> -> vector<16x32xf32>
    %c73 = arith.constant 73 : index
    %c0_114 = arith.constant 0 : index
    %299 = vector.load %arg1[%c73, %c0_114] : memref<80x128xf32, #tpu.memory_space<vmem>>, vector<1x32xf32>
    %300 = vector.broadcast %299 : vector<1x32xf32> to vector<16x32xf32>
    %301 = arith.addf %298, %300 : vector<16x32xf32>
    %302 = arith.addf %301, %276 : vector<16x32xf32>
    %cst_115 = arith.constant dense<0.000000e+00> : vector<16xf32>
    %303 = vector.multi_reduction <add>, %302, %cst_115 [1] : vector<16x32xf32> to vector<16xf32>
    %304 = vector.shape_cast %303 : vector<16xf32> to vector<16x1xf32>
    %305 = arith.mulf %302, %302 : vector<16x32xf32>
    %cst_116 = arith.constant dense<0.000000e+00> : vector<16xf32>
    %306 = vector.multi_reduction <add>, %305, %cst_116 [1] : vector<16x32xf32> to vector<16xf32>
    %307 = vector.shape_cast %306 : vector<16xf32> to vector<16x1xf32>
    %cst_117 = arith.constant 3.125000e-02 : f32
    %308 = vector.broadcast %cst_117 : f32 to vector<16x1xf32>
    %309 = arith.mulf %304, %308 : vector<16x1xf32>
    %cst_118 = arith.constant 3.125000e-02 : f32
    %310 = vector.broadcast %cst_118 : f32 to vector<16x1xf32>
    %311 = arith.mulf %307, %310 : vector<16x1xf32>
    %312 = arith.mulf %309, %309 : vector<16x1xf32>
    %313 = arith.subf %311, %312 : vector<16x1xf32>
    %314 = vector.broadcast %309 : vector<16x1xf32> to vector<16x32xf32>
    %315 = arith.subf %302, %314 : vector<16x32xf32>
    %cst_119 = arith.constant 9.99999996E-13 : f32
    %316 = vector.broadcast %cst_119 : f32 to vector<16x1xf32>
    %317 = arith.addf %313, %316 : vector<16x1xf32>
    %318 = math.rsqrt %317 : vector<16x1xf32>
    %319 = vector.broadcast %318 : vector<16x1xf32> to vector<16x32xf32>
    %320 = arith.mulf %315, %319 : vector<16x32xf32>
    %c74 = arith.constant 74 : index
    %c0_120 = arith.constant 0 : index
    %321 = vector.load %arg1[%c74, %c0_120] : memref<80x128xf32, #tpu.memory_space<vmem>>, vector<1x32xf32>
    %322 = vector.broadcast %321 : vector<1x32xf32> to vector<16x32xf32>
    %323 = arith.mulf %320, %322 : vector<16x32xf32>
    %c75 = arith.constant 75 : index
    %c0_121 = arith.constant 0 : index
    %324 = vector.load %arg1[%c75, %c0_121] : memref<80x128xf32, #tpu.memory_space<vmem>>, vector<1x32xf32>
    %325 = vector.broadcast %324 : vector<1x32xf32> to vector<16x32xf32>
    %326 = arith.addf %323, %325 : vector<16x32xf32>
    %327 = arith.addf %326, %1 : vector<16x32xf32>
    %328 = arith.truncf %327 : vector<16x32xf32> to vector<16x32xbf16>
    %c640 = arith.constant 640 : index
    %c0_122 = arith.constant 0 : index
    %329 = vector.load %arg2[%c640, %c0_122] : memref<672x128xbf16, #tpu.memory_space<vmem>>, vector<32x128xbf16>
    %cst_123 = arith.constant dense<0.000000e+00> : vector<16x128xf32>
    %330 = tpu.matmul %328, %329, %cst_123 {dimension_numbers = #tpu.dot_dimension_numbers<[1], [0], [0], [1], [0, 0, 1, 1], [], []>} : vector<16x32xbf16>, vector<32x128xbf16>, vector<16x128xf32> -> vector<16x128xf32>
    %c76 = arith.constant 76 : index
    %c0_124 = arith.constant 0 : index
    %331 = vector.load %arg1[%c76, %c0_124] : memref<80x128xf32, #tpu.memory_space<vmem>>, vector<1x128xf32>
    %332 = vector.broadcast %331 : vector<1x128xf32> to vector<16x128xf32>
    %333 = arith.addf %330, %332 : vector<16x128xf32>
    %c0_125 = arith.constant 0 : index
    %c0_126 = arith.constant 0 : index
    %334 = vector.load %arg3[%c0_125, %c0_126] : memref<16x128xf32, #tpu.memory_space<vmem>>, vector<16x128xf32>
    tpu.vector_store %arg3[%c0_125, %c0_126], %333 {strides = array<i32>} : memref<16x128xf32, #tpu.memory_space<vmem>>, vector<16x128xf32>,
    return
  }
  func.func @transform_0(%arg0: i32) -> (i32, i32) {
    %c0_i32 = arith.constant 0 : i32
    %c0_i32_0 = arith.constant 0 : i32
    %c0_i32_1 = arith.constant 0 : i32
    return %c0_i32, %c0_i32_0 : i32, i32
  }
  func.func @transform_1(%arg0: i32) -> (i32, i32) {
    %c0_i32 = arith.constant 0 : i32
    %c0_i32_0 = arith.constant 0 : i32
    %c0_i32_1 = arith.constant 0 : i32
    return %c0_i32, %c0_i32_0 : i32, i32
  }
  func.func @transform_2(%arg0: i32) -> (i32, i32) {
    %c0_i32 = arith.constant 0 : i32
    %c0_i32_0 = arith.constant 0 : i32
    %c0_i32_1 = arith.constant 0 : i32
    return %c0_i32, %c0_i32_0 : i32, i32
  }
}

</mosaic_0001>

<llo_original>
// kernel: _lambda_.1
$region0: #{_lambda_.1}
  #allocation0 [shape = 'u32[]', space=smem, size = 0x4, offset = 0x4, fixed_abs, tag = 'smem constant byte address 0x4 - core index']
  #allocation1 [shape = 'u32[144,128]{1,0:T(1,128)}', space=vmem, size = 0x12000, scoped, tag = 'internal scratch']
  %s0 = inlined_call_operand.vmem [shape: f32[80,128], index: 0, kind: input, shape index: {}]
  %s1 = inlined_call_operand.vmem [shape: bf16[672,128], index: 1, kind: input, shape index: {}]
  %s2 = inlined_call_operand.vmem [shape: f32[16,128], index: 2, kind: output, shape index: {}]
  %s3 = sld [smem:[#allocation0]]
  $region18: #{_lambda_.1} parent=0
    _
  %s5 = ssub.s32 1, %s3
  %s6 = scalar_select 0, %s5, %s3
  // Predicated region
  $region2: #{_lambda_.1} parent=0 // pred_check
    _
  $region3: #{_lambda_.1} parent=0 // pred_check_branch
    %8 = sbr.rel (0) target = $region5
  $region4: #{_lambda_.1} parent=0 // pred_region
    _
  $region5: #{_lambda_.1} parent=0 // pred_fallthru
    _
  // Predicated region
  $region6: #{_lambda_.1} parent=0 // pred_check
    _
  $region7: #{_lambda_.1} parent=0 // pred_check_branch
    %10 = sbr.rel (0) target = $region9
  $region8: #{_lambda_.1} parent=0 // pred_region
    _
  $region9: #{_lambda_.1} parent=0 // pred_fallthru
    _
  %v12 = vld [vmem:[%s0] sm:$0xff]
  %v13 = vld [vmem:[%s0 + $0x8] sm:$0xff]
  %v14 = vld [vmem:[%s0 + $0x10] sm:$0xff]
  %v15 = vld [vmem:[%s0 + $0x18] sm:$0xff]
  %v16 = vld [vmem:[%s0 + $0x20] sm:$0xff]
  %v17 = vld [vmem:[%s0 + $0x28] sm:$0xff]
  %vm18 = vcmask 261120
  %v19 = vsel %vm18, %v12, 0.0
  %20 = vadd.xlane.f32.xlu0 %v19
  %v21 = vpop.xlane.xlu0 %20
  %v22 = vsel %vm18, %v13, 0.0
  %23 = vadd.xlane.f32.xlu0 %v22
  %v24 = vpop.xlane.xlu0 %23
  %v25 = vmul.f32 %v12, %v12
  %v26 = vmul.f32 %v13, %v13
  %v27 = vsel %vm18, %v25, 0.0
  %28 = vadd.xlane.f32.xlu0 %v27
  %v29 = vpop.xlane.xlu0 %28
  %v30 = vsel %vm18, %v26, 0.0
  %31 = vadd.xlane.f32.xlu0 %v30
  %v32 = vpop.xlane.xlu0 %31
  %v33 = vmul.f32 %v21, 0.03125
  %v34 = vmul.f32 %v24, 0.03125
  %v35 = vmul.f32 %v29, 0.03125
  %v36 = vmul.f32 %v32, 0.03125
  %v37 = vmul.f32 %v33, %v33
  %v38 = vmul.f32 %v34, %v34
  %v39 = vsub.f32 %v35, %v37
  %v40 = vsub.f32 %v36, %v38
  %v41 = vsub.f32 %v12, %v33
  %v42 = vsub.f32 %v13, %v34
  %v43 = vadd.f32 %v39, 1e-12
  %v44 = vadd.f32 %v40, 1e-12
  %v45 = vrsqrt.pop %v43
  %v46 = vrsqrt.pop %v44
  %v47 = vmul.f32 %v41, %v45
  %v48 = vmul.f32 %v42, %v46
  %v49 = vld [vmem:[%s0 + $0x30] sm:$0x1]
  %v50 = vlaneseq
  %v51 = vshrl.u32 %v50, 7
  %v52 = vsub.s32 0, %v51
  %v53 = vrot.slane %v49, %v52
  %v54 = vmul.f32 %v47, %v53
  %v55 = vmul.f32 %v48, %v53
  %v56 = vld [vmem:[%s0 + $0x31] sm:$0x1]
  %v57 = vlaneseq
  %v58 = vshrl.u32 %v57, 7
  %v59 = vsub.s32 0, %v58
  %v60 = vrot.slane %v56, %v59
  %v61 = vadd.f32 %v54, %v60
  %v62 = vadd.f32 %v55, %v60
  %v63 = vpack.c.bf16 %v62, %v61
  %v64 = vld [vmem:[%s1] sm:$0xf]
  %v65 = vld [vmem:[%s1 + $0x4] sm:$0xf]
  %v66 = vld [vmem:[%s1 + $0x8] sm:$0xf]
  %v67 = vld [vmem:[%s1 + $0xc] sm:$0xf]
  %v68 = vld [vmem:[%s0 + $0x32] sm:$0x1]
  %v69 = vlaneseq
  %v70 = vshrl.u32 %v69, 7
  %v71 = vsub.s32 0, %v70
  %v72 = vrot.slane %v68, %v71
  %v77 = vunpack.c.l.b16 %v64
  %v78 = vunpack.c.l.b16 %v65
  %v79 = vunpack.c.l.b16 %v66
  %v80 = vunpack.c.l.b16 %v67
  %v81 = vpack.c.b16 %v78, %v77
  %v82 = vpack.c.b16 %v80, %v79
  %v86 = vsel %vm18, %v63, 0
  %88 = vmatprep.subr.bf16.mxu0 0
  %89 = vmatpush1.bf16.msra.mxu0 %v81
  %90 = vmatprep.subr.bf16.mxu0 0
  %91 = vmatpush1.bf16.msra.mxu0 %v82
  %92 = vmatprep.subr.bf16.mxu0 0
  %93 = vmatpush1.bf16.msra.mxu0 0
  %94 = vmatprep.subr.bf16.mxu0 0
  %95 = vmatpush1.bf16.msra.mxu0 0
  %96 = vmatprep.subr.bf16.mxu0 0
  %97 = vmatpush1.bf16.msra.mxu0 0
  %98 = vmatprep.subr.bf16.mxu0 0
  %99 = vmatpush1.bf16.msra.mxu0 0
  %100 = vmatprep.subr.bf16.mxu0 0
  %101 = vmatpush1.bf16.msra.mxu0 0
  %102 = vmatprep.subr.bf16.mxu0 0
  %103 = vmatpush1.bf16.msra.mxu0 0
  %104 = vmatprep.subr.bf16.mxu0 0
  %105 = vmatpush1.bf16.msra.mxu0 0
  %106 = vmatprep.subr.bf16.mxu0 0
  %107 = vmatpush1.bf16.msra.mxu0 0
  %108 = vmatprep.subr.bf16.mxu0 0
  %109 = vmatpush1.bf16.msra.mxu0 0
  %110 = vmatprep.subr.bf16.mxu0 0
  %111 = vmatpush1.bf16.msra.mxu0 0
  %112 = vmatprep.subr.bf16.mxu0 0
  %113 = vmatpush1.bf16.msra.mxu0 0
  %114 = vmatprep.subr.bf16.mxu0 0
  %115 = vmatpush1.bf16.msra.mxu0 0
  %116 = vmatprep.subr.bf16.mxu0 0
  %117 = vmatpush1.bf16.msra.mxu0 0
  %118 = vmatprep.subr.bf16.mxu0 0
  %119 = vmatpush1.bf16.msra.mxu0 0
  %120 = vmatprep.mubr.bf16.mxu0 0
  %121 = vmatmul.mubr.bf16.gmra.mrb[0].mxu0 %v86
  %v122 = vpop.f32.mrb[0].mxu0
  %v123 = vadd.f32 %v72, %v122
  %v124 = vpop.f32.mrb[0].mxu0
  %v125 = vpop.f32.mrb[0].mxu0
  %v126 = vadd.f32 %v72, %v125
  %v127 = vpop.f32.mrb[0].mxu0
  %128 = vdwg.mxu0
  %v129 = vld [vmem:[%s1 + $0x10] sm:$0xf]
  %v130 = vld [vmem:[%s1 + $0x14] sm:$0xf]
  %v131 = vld [vmem:[%s1 + $0x18] sm:$0xf]
  %v132 = vld [vmem:[%s1 + $0x1c] sm:$0xf]
  %v133 = vld [vmem:[%s0 + $0x33] sm:$0x1]
  %v134 = vlaneseq
  %v135 = vshrl.u32 %v134, 7
  %v136 = vsub.s32 0, %v135
  %v137 = vrot.slane %v133, %v136
  %v142 = vunpack.c.l.b16 %v129
  %v143 = vunpack.c.l.b16 %v130
  %v144 = vunpack.c.l.b16 %v131
  %v145 = vunpack.c.l.b16 %v132
  %v146 = vpack.c.b16 %v143, %v142
  %v147 = vpack.c.b16 %v145, %v144
  %150 = vmatprep.subr.bf16.mxu0 0
  %151 = vmatpush1.bf16.msra.mxu0 %v146
  %152 = vmatprep.subr.bf16.mxu0 0
  %153 = vmatpush1.bf16.msra.mxu0 %v147
  %154 = vmatprep.subr.bf16.mxu0 0
  %155 = vmatpush1.bf16.msra.mxu0 0
  %156 = vmatprep.subr.bf16.mxu0 0
  %157 = vmatpush1.bf16.msra.mxu0 0
  %158 = vmatprep.subr.bf16.mxu0 0
  %159 = vmatpush1.bf16.msra.mxu0 0
  %160 = vmatprep.subr.bf16.mxu0 0
  %161 = vmatpush1.bf16.msra.mxu0 0
  %162 = vmatprep.subr.bf16.mxu0 0
  %163 = vmatpush1.bf16.msra.mxu0 0
  %164 = vmatprep.subr.bf16.mxu0 0
  %165 = vmatpush1.bf16.msra.mxu0 0
  %166 = vmatprep.subr.bf16.mxu0 0
  %167 = vmatpush1.bf16.msra.mxu0 0
  %168 = vmatprep.subr.bf16.mxu0 0
  %169 = vmatpush1.bf16.msra.mxu0 0
  %170 = vmatprep.subr.bf16.mxu0 0
  %171 = vmatpush1.bf16.msra.mxu0 0
  %172 = vmatprep.subr.bf16.mxu0 0
  %173 = vmatpush1.bf16.msra.mxu0 0
  %174 = vmatprep.subr.bf16.mxu0 0
  %175 = vmatpush1.bf16.msra.mxu0 0
  %176 = vmatprep.subr.bf16.mxu0 0
  %177 = vmatpush1.bf16.msra.mxu0 0
  %178 = vmatprep.subr.bf16.mxu0 0
  %179 = vmatpush1.bf16.msra.mxu0 0
  %180 = vmatprep.subr.bf16.mxu0 0
  %181 = vmatpush1.bf16.msra.mxu0 0
  %182 = vmatprep.mubr.bf16.mxu0 0
  %183 = vmatmul.mubr.bf16.gmra.mrb[0].mxu0 %v86
  %v184 = vpop.f32.mrb[0].mxu0
  %v185 = vadd.f32 %v137, %v184
  %v186 = vpop.f32.mrb[0].mxu0
  %v187 = vpop.f32.mrb[0].mxu0
  %v188 = vadd.f32 %v137, %v187
  %v189 = vpop.f32.mrb[0].mxu0
  %190 = vdwg.mxu0
  %v191 = vld [vmem:[%s1 + $0x20] sm:$0xf]
  %v192 = vld [vmem:[%s1 + $0x24] sm:$0xf]
  %v193 = vld [vmem:[%s1 + $0x28] sm:$0xf]
  %v194 = vld [vmem:[%s1 + $0x2c] sm:$0xf]
  %v195 = vld [vmem:[%s0 + $0x34] sm:$0x1]
  %v196 = vlaneseq
  %v197 = vshrl.u32 %v196, 7
  %v198 = vsub.s32 0, %v197
  %v199 = vrot.slane %v195, %v198
  %v204 = vunpack.c.l.b16 %v191
  %v205 = vunpack.c.l.b16 %v192
  %v206 = vunpack.c.l.b16 %v193
  %v207 = vunpack.c.l.b16 %v194
  %v208 = vpack.c.b16 %v205, %v204
  %v209 = vpack.c.b16 %v207, %v206
  %212 = vmatprep.subr.bf16.mxu0 0
  %213 = vmatpush1.bf16.msra.mxu0 %v208
  %214 = vmatprep.subr.bf16.mxu0 0
  %215 = vmatpush1.bf16.msra.mxu0 %v209
  %216 = vmatprep.subr.bf16.mxu0 0
  %217 = vmatpush1.bf16.msra.mxu0 0
  %218 = vmatprep.subr.bf16.mxu0 0
  %219 = vmatpush1.bf16.msra.mxu0 0
  %220 = vmatprep.subr.bf16.mxu0 0
  %221 = vmatpush1.bf16.msra.mxu0 0
  %222 = vmatprep.subr.bf16.mxu0 0
  %223 = vmatpush1.bf16.msra.mxu0 0
  %224 = vmatprep.subr.bf16.mxu0 0
  %225 = vmatpush1.bf16.msra.mxu0 0
  %226 = vmatprep.subr.bf16.mxu0 0
  %227 = vmatpush1.bf16.msra.mxu0 0
  %228 = vmatprep.subr.bf16.mxu0 0
  %229 = vmatpush1.bf16.msra.mxu0 0
  %230 = vmatprep.subr.bf16.mxu0 0
  %231 = vmatpush1.bf16.msra.mxu0 0
  %232 = vmatprep.subr.bf16.mxu0 0
  %233 = vmatpush1.bf16.msra.mxu0 0
  %234 = vmatprep.subr.bf16.mxu0 0
  %235 = vmatpush1.bf16.msra.mxu0 0
  %236 = vmatprep.subr.bf16.mxu0 0
  %237 = vmatpush1.bf16.msra.mxu0 0
  %238 = vmatprep.subr.bf16.mxu0 0
  %239 = vmatpush1.bf16.msra.mxu0 0
  %240 = vmatprep.subr.bf16.mxu0 0
  %241 = vmatpush1.bf16.msra.mxu0 0
  %242 = vmatprep.subr.bf16.mxu0 0
  %243 = vmatpush1.bf16.msra.mxu0 0
  %244 = vmatprep.mubr.bf16.mxu0 0
  %245 = vmatmul.mubr.bf16.gmra.mrb[0].mxu0 %v86
  %v246 = vpop.f32.mrb[0].mxu0
  %v247 = vadd.f32 %v199, %v246
  %v248 = vpop.f32.mrb[0].mxu0
  %v249 = vpop.f32.mrb[0].mxu0
  %v250 = vadd.f32 %v199, %v249
  %v251 = vpop.f32.mrb[0].mxu0
  %252 = vdwg.mxu0
  %v253 = vpack.c.bf16 %v126, %v123
  %v254 = vpack.c.bf16 %v188, %v185
  %vm255 = vcmask 130048
  %v257 = vsel %vm255, %v253, 0
  %v260 = vsel %vm255, %v254, 0
  %262 = vmatprep.subr.bf16.mxu0 0
  %263 = vmatpush1.bf16.xpose.msra.mxu0 %v260
  %264 = vmatprep.subr.bf16.mxu0 0
  %265 = vmatpush1.bf16.xpose.msra.mxu0 0
  %266 = vmatprep.subr.bf16.mxu0 0
  %267 = vmatpush1.bf16.xpose.msra.mxu0 0
  %268 = vmatprep.subr.bf16.mxu0 0
  %269 = vmatpush1.bf16.xpose.msra.mxu0 0
  %270 = vmatprep.subr.bf16.mxu0 0
  %271 = vmatpush1.bf16.xpose.msra.mxu0 0
  %272 = vmatprep.subr.bf16.mxu0 0
  %273 = vmatpush1.bf16.xpose.msra.mxu0 0
  %274 = vmatprep.subr.bf16.mxu0 0
  %275 = vmatpush1.bf16.xpose.msra.mxu0 0
  %276 = vmatprep.subr.bf16.mxu0 0
  %277 = vmatpush1.bf16.xpose.msra.mxu0 0
  %278 = vmatprep.subr.bf16.mxu0 0
  %279 = vmatpush1.bf16.xpose.msra.mxu0 0
  %280 = vmatprep.subr.bf16.mxu0 0
  %281 = vmatpush1.bf16.xpose.msra.mxu0 0
  %282 = vmatprep.subr.bf16.mxu0 0
  %283 = vmatpush1.bf16.xpose.msra.mxu0 0
  %284 = vmatprep.subr.bf16.mxu0 0
  %285 = vmatpush1.bf16.xpose.msra.mxu0 0
  %286 = vmatprep.subr.bf16.mxu0 0
  %287 = vmatpush1.bf16.xpose.msra.mxu0 0
  %288 = vmatprep.subr.bf16.mxu0 0
  %289 = vmatpush1.bf16.xpose.msra.mxu0 0
  %290 = vmatprep.subr.bf16.mxu0 0
  %291 = vmatpush1.bf16.xpose.msra.mxu0 0
  %292 = vmatprep.subr.bf16.mxu0 0
  %293 = vmatpush1.bf16.xpose.msra.mxu0 0
  %294 = vmatprep.mubr.bf16.mxu0 0
  %295 = vmatmul.mubr.bf16.gmra.mrb[0].mxu0 %v257
  %v296 = vpop.f32.mrb[0].mxu0
  %v297 = vadd.f32 %v16, %v296
  %v298 = vpop.f32.mrb[0].mxu0
  %v299 = vpop.f32.mrb[0].mxu0
  %v300 = vadd.f32 %v17, %v299
  %v301 = vpop.f32.mrb[0].mxu0
  %302 = vdwg.mxu0
  %v303 = vsel %vm255, %v297, -inf
  %304 = vmax.xlane.f32.xlu0 %v303
  %v305 = vpop.xlane.xlu0 %304
  %v306 = vsel %vm255, %v300, -inf
  %307 = vmax.xlane.f32.xlu0 %v306
  %v308 = vpop.xlane.xlu0 %307
  %v309 = vsub.f32 %v297, %v305
  %v310 = vsub.f32 %v300, %v308
  %v311 = vmul.f32 %v309, 1.442695
  %v312 = vpow.pop %v311
  %v313 = vmul.f32 %v310, 1.442695
  %v314 = vpow.pop %v313
  %v315 = vsel %vm255, %v312, 0.0
  %316 = vadd.xlane.f32.xlu0 %v315
  %v317 = vpop.xlane.xlu0 %316
  %v318 = vsel %vm255, %v314, 0.0
  %319 = vadd.xlane.f32.xlu0 %v318
  %v320 = vpop.xlane.xlu0 %319
  %v321 = vrcp.pop %v317
  %v322 = vrcp.pop %v320
  %v323 = vmul.f32 %v312, %v321
  %v324 = vmul.f32 %v314, %v322
  %v325 = vpack.c.bf16 %v324, %v323
  %v326 = vpack.c.bf16 %v250, %v247
  %v328 = vsel %vm255, %v325, 0
  %330 = vmatprep.subr.bf16.mxu0 0
  %331 = vmatpush1.bf16.msra.mxu0 %v326
  %332 = vmatprep.subr.bf16.mxu0 0
  %333 = vmatpush1.bf16.msra.mxu0 0
  %334 = vmatprep.subr.bf16.mxu0 0
  %335 = vmatpush1.bf16.msra.mxu0 0
  %336 = vmatprep.subr.bf16.mxu0 0
  %337 = vmatpush1.bf16.msra.mxu0 0
  %338 = vmatprep.subr.bf16.mxu0 0
  %339 = vmatpush1.bf16.msra.mxu0 0
  %340 = vmatprep.subr.bf16.mxu0 0
  %341 = vmatpush1.bf16.msra.mxu0 0
  %342 = vmatprep.subr.bf16.mxu0 0
  %343 = vmatpush1.bf16.msra.mxu0 0
  %344 = vmatprep.subr.bf16.mxu0 0
  %345 = vmatpush1.bf16.msra.mxu0 0
  %346 = vmatprep.subr.bf16.mxu0 0
  %347 = vmatpush1.bf16.msra.mxu0 0
  %348 = vmatprep.subr.bf16.mxu0 0
  %349 = vmatpush1.bf16.msra.mxu0 0
  %350 = vmatprep.subr.bf16.mxu0 0
  %351 = vmatpush1.bf16.msra.mxu0 0
  %352 = vmatprep.subr.bf16.mxu0 0
  %353 = vmatpush1.bf16.msra.mxu0 0
  %354 = vmatprep.subr.bf16.mxu0 0
  %355 = vmatpush1.bf16.msra.mxu0 0
  %356 = vmatprep.subr.bf16.mxu0 0
  %357 = vmatpush1.bf16.msra.mxu0 0
  %358 = vmatprep.subr.bf16.mxu0 0
  %359 = vmatpush1.bf16.msra.mxu0 0
  %360 = vmatprep.subr.bf16.mxu0 0
  %361 = vmatpush1.bf16.msra.mxu0 0
  %362 = vmatprep.mubr.bf16.mxu0 0
  %363 = vmatmul.mubr.bf16.gmra.mrb[0].mxu0 %v328
  %v364 = vpop.f32.mrb[0].mxu0
  %v365 = vadd.f32 0.0, %v364
  %v366 = vpop.f32.mrb[0].mxu0
  %v367 = vpop.f32.mrb[0].mxu0
  %v368 = vadd.f32 0.0, %v367
  %v369 = vpop.f32.mrb[0].mxu0
  %370 = vdwg.mxu0
  %v371 = vpack.c.bf16 %v368, %v365
  %v372 = vld [vmem:[%s1 + $0x60] sm:$0xf]
  %v373 = vld [vmem:[%s1 + $0x64] sm:$0xf]
  %v374 = vld [vmem:[%s1 + $0x30] sm:$0xf]
  %v375 = vld [vmem:[%s1 + $0x34] sm:$0xf]
  %v376 = vld [vmem:[%s1 + $0x38] sm:$0xf]
  %v377 = vld [vmem:[%s1 + $0x3c] sm:$0xf]
  %v378 = vld [vmem:[%s0 + $0x35] sm:$0x1]
  %v379 = vlaneseq
  %v380 = vshrl.u32 %v379, 7
  %v381 = vsub.s32 0, %v380
  %v382 = vrot.slane %v378, %v381
  %v387 = vunpack.c.l.b16 %v374
  %v388 = vunpack.c.l.b16 %v375
  %v389 = vunpack.c.l.b16 %v376
  %v390 = vunpack.c.l.b16 %v377
  %v391 = vpack.c.b16 %v388, %v387
  %v392 = vpack.c.b16 %v390, %v389
  %395 = vmatprep.subr.bf16.mxu0 0
  %396 = vmatpush1.bf16.msra.mxu0 %v391
  %397 = vmatprep.subr.bf16.mxu0 0
  %398 = vmatpush1.bf16.msra.mxu0 %v392
  %399 = vmatprep.subr.bf16.mxu0 0
  %400 = vmatpush1.bf16.msra.mxu0 0
  %401 = vmatprep.subr.bf16.mxu0 0
  %402 = vmatpush1.bf16.msra.mxu0 0
  %403 = vmatprep.subr.bf16.mxu0 0
  %404 = vmatpush1.bf16.msra.mxu0 0
  %405 = vmatprep.subr.bf16.mxu0 0
  %406 = vmatpush1.bf16.msra.mxu0 0
  %407 = vmatprep.subr.bf16.mxu0 0
  %408 = vmatpush1.bf16.msra.mxu0 0
  %409 = vmatprep.subr.bf16.mxu0 0
  %410 = vmatpush1.bf16.msra.mxu0 0
  %411 = vmatprep.subr.bf16.mxu0 0
  %412 = vmatpush1.bf16.msra.mxu0 0
  %413 = vmatprep.subr.bf16.mxu0 0
  %414 = vmatpush1.bf16.msra.mxu0 0
  %415 = vmatprep.subr.bf16.mxu0 0
  %416 = vmatpush1.bf16.msra.mxu0 0
  %417 = vmatprep.subr.bf16.mxu0 0
  %418 = vmatpush1.bf16.msra.mxu0 0
  %419 = vmatprep.subr.bf16.mxu0 0
  %420 = vmatpush1.bf16.msra.mxu0 0
  %421 = vmatprep.subr.bf16.mxu0 0
  %422 = vmatpush1.bf16.msra.mxu0 0
  %423 = vmatprep.subr.bf16.mxu0 0
  %424 = vmatpush1.bf16.msra.mxu0 0
  %425 = vmatprep.subr.bf16.mxu0 0
  %426 = vmatpush1.bf16.msra.mxu0 0
  %427 = vmatprep.mubr.bf16.mxu0 0
  %428 = vmatmul.mubr.bf16.gmra.mrb[0].mxu0 %v86
  %v429 = vpop.f32.mrb[0].mxu0
  %v430 = vadd.f32 %v382, %v429
  %v431 = vpop.f32.mrb[0].mxu0
  %v432 = vpop.f32.mrb[0].mxu0
  %v433 = vadd.f32 %v382, %v432
  %v434 = vpop.f32.mrb[0].mxu0
  %435 = vdwg.mxu0
  %v436 = vld [vmem:[%s1 + $0x40] sm:$0xf]
  %v437 = vld [vmem:[%s1 + $0x44] sm:$0xf]
  %v438 = vld [vmem:[%s1 + $0x48] sm:$0xf]
  %v439 = vld [vmem:[%s1 + $0x4c] sm:$0xf]
  %v440 = vld [vmem:[%s0 + $0x36] sm:$0x1]
  %v441 = vlaneseq
  %v442 = vshrl.u32 %v441, 7
  %v443 = vsub.s32 0, %v442
  %v444 = vrot.slane %v440, %v443
  %v449 = vunpack.c.l.b16 %v436
  %v450 = vunpack.c.l.b16 %v437
  %v451 = vunpack.c.l.b16 %v438
  %v452 = vunpack.c.l.b16 %v439
  %v453 = vpack.c.b16 %v450, %v449
  %v454 = vpack.c.b16 %v452, %v451
  %457 = vmatprep.subr.bf16.mxu0 0
  %458 = vmatpush1.bf16.msra.mxu0 %v453
  %459 = vmatprep.subr.bf16.mxu0 0
  %460 = vmatpush1.bf16.msra.mxu0 %v454
  %461 = vmatprep.subr.bf16.mxu0 0
  %462 = vmatpush1.bf16.msra.mxu0 0
  %463 = vmatprep.subr.bf16.mxu0 0
  %464 = vmatpush1.bf16.msra.mxu0 0
  %465 = vmatprep.subr.bf16.mxu0 0
  %466 = vmatpush1.bf16.msra.mxu0 0
  %467 = vmatprep.subr.bf16.mxu0 0
  %468 = vmatpush1.bf16.msra.mxu0 0
  %469 = vmatprep.subr.bf16.mxu0 0
  %470 = vmatpush1.bf16.msra.mxu0 0
  %471 = vmatprep.subr.bf16.mxu0 0
  %472 = vmatpush1.bf16.msra.mxu0 0
  %473 = vmatprep.subr.bf16.mxu0 0
  %474 = vmatpush1.bf16.msra.mxu0 0
  %475 = vmatprep.subr.bf16.mxu0 0
  %476 = vmatpush1.bf16.msra.mxu0 0
  %477 = vmatprep.subr.bf16.mxu0 0
  %478 = vmatpush1.bf16.msra.mxu0 0
  %479 = vmatprep.subr.bf16.mxu0 0
  %480 = vmatpush1.bf16.msra.mxu0 0
  %481 = vmatprep.subr.bf16.mxu0 0
  %482 = vmatpush1.bf16.msra.mxu0 0
  %483 = vmatprep.subr.bf16.mxu0 0
  %484 = vmatpush1.bf16.msra.mxu0 0
  %485 = vmatprep.subr.bf16.mxu0 0
  %486 = vmatpush1.bf16.msra.mxu0 0
  %487 = vmatprep.subr.bf16.mxu0 0
  %488 = vmatpush1.bf16.msra.mxu0 0
  %489 = vmatprep.mubr.bf16.mxu0 0
  %490 = vmatmul.mubr.bf16.gmra.mrb[0].mxu0 %v86
  %v491 = vpop.f32.mrb[0].mxu0
  %v492 = vadd.f32 %v444, %v491
  %v493 = vpop.f32.mrb[0].mxu0
  %v494 = vpop.f32.mrb[0].mxu0
  %v495 = vadd.f32 %v444, %v494
  %v496 = vpop.f32.mrb[0].mxu0
  %497 = vdwg.mxu0
  %v498 = vld [vmem:[%s1 + $0x50] sm:$0xf]
  %v499 = vld [vmem:[%s1 + $0x54] sm:$0xf]
  %v500 = vld [vmem:[%s1 + $0x58] sm:$0xf]
  %v501 = vld [vmem:[%s1 + $0x5c] sm:$0xf]
  %v502 = vld [vmem:[%s0 + $0x37] sm:$0x1]
  %v503 = vlaneseq
  %v504 = vshrl.u32 %v503, 7
  %v505 = vsub.s32 0, %v504
  %v506 = vrot.slane %v502, %v505
  %v511 = vunpack.c.l.b16 %v498
  %v512 = vunpack.c.l.b16 %v499
  %v513 = vunpack.c.l.b16 %v500
  %v514 = vunpack.c.l.b16 %v501
  %v515 = vpack.c.b16 %v512, %v511
  %v516 = vpack.c.b16 %v514, %v513
  %519 = vmatprep.subr.bf16.mxu0 0
  %520 = vmatpush1.bf16.msra.mxu0 %v515
  %521 = vmatprep.subr.bf16.mxu0 0
  %522 = vmatpush1.bf16.msra.mxu0 %v516
  %523 = vmatprep.subr.bf16.mxu0 0
  %524 = vmatpush1.bf16.msra.mxu0 0
  %525 = vmatprep.subr.bf16.mxu0 0
  %526 = vmatpush1.bf16.msra.mxu0 0
  %527 = vmatprep.subr.bf16.mxu0 0
  %528 = vmatpush1.bf16.msra.mxu0 0
  %529 = vmatprep.subr.bf16.mxu0 0
  %530 = vmatpush1.bf16.msra.mxu0 0
  %531 = vmatprep.subr.bf16.mxu0 0
  %532 = vmatpush1.bf16.msra.mxu0 0
  %533 = vmatprep.subr.bf16.mxu0 0
  %534 = vmatpush1.bf16.msra.mxu0 0
  %535 = vmatprep.subr.bf16.mxu0 0
  %536 = vmatpush1.bf16.msra.mxu0 0
  %537 = vmatprep.subr.bf16.mxu0 0
  %538 = vmatpush1.bf16.msra.mxu0 0
  %539 = vmatprep.subr.bf16.mxu0 0
  %540 = vmatpush1.bf16.msra.mxu0 0
  %541 = vmatprep.subr.bf16.mxu0 0
  %542 = vmatpush1.bf16.msra.mxu0 0
  %543 = vmatprep.subr.bf16.mxu0 0
  %544 = vmatpush1.bf16.msra.mxu0 0
  %545 = vmatprep.subr.bf16.mxu0 0
  %546 = vmatpush1.bf16.msra.mxu0 0
  %547 = vmatprep.subr.bf16.mxu0 0
  %548 = vmatpush1.bf16.msra.mxu0 0
  %549 = vmatprep.subr.bf16.mxu0 0
  %550 = vmatpush1.bf16.msra.mxu0 0
  %551 = vmatprep.mubr.bf16.mxu0 0
  %552 = vmatmul.mubr.bf16.gmra.mrb[0].mxu0 %v86
  %v553 = vpop.f32.mrb[0].mxu0
  %v554 = vadd.f32 %v506, %v553
  %v555 = vpop.f32.mrb[0].mxu0
  %v556 = vpop.f32.mrb[0].mxu0
  %v557 = vadd.f32 %v506, %v556
  %v558 = vpop.f32.mrb[0].mxu0
  %559 = vdwg.mxu0
  %v560 = vpack.c.bf16 %v433, %v430
  %v561 = vpack.c.bf16 %v495, %v492
  %v563 = vsel %vm255, %v560, 0
  %v566 = vsel %vm255, %v561, 0
  %568 = vmatprep.subr.bf16.mxu0 0
  %569 = vmatpush1.bf16.xpose.msra.mxu0 %v566
  %570 = vmatprep.subr.bf16.mxu0 0
  %571 = vmatpush1.bf16.xpose.msra.mxu0 0
  %572 = vmatprep.subr.bf16.mxu0 0
  %573 = vmatpush1.bf16.xpose.msra.mxu0 0
  %574 = vmatprep.subr.bf16.mxu0 0
  %575 = vmatpush1.bf16.xpose.msra.mxu0 0
  %576 = vmatprep.subr.bf16.mxu0 0
  %577 = vmatpush1.bf16.xpose.msra.mxu0 0
  %578 = vmatprep.subr.bf16.mxu0 0
  %579 = vmatpush1.bf16.xpose.msra.mxu0 0
  %580 = vmatprep.subr.bf16.mxu0 0
  %581 = vmatpush1.bf16.xpose.msra.mxu0 0
  %582 = vmatprep.subr.bf16.mxu0 0
  %583 = vmatpush1.bf16.xpose.msra.mxu0 0
  %584 = vmatprep.subr.bf16.mxu0 0
  %585 = vmatpush1.bf16.xpose.msra.mxu0 0
  %586 = vmatprep.subr.bf16.mxu0 0
  %587 = vmatpush1.bf16.xpose.msra.mxu0 0
  %588 = vmatprep.subr.bf16.mxu0 0
  %589 = vmatpush1.bf16.xpose.msra.mxu0 0
  %590 = vmatprep.subr.bf16.mxu0 0
  %591 = vmatpush1.bf16.xpose.msra.mxu0 0
  %592 = vmatprep.subr.bf16.mxu0 0
  %593 = vmatpush1.bf16.xpose.msra.mxu0 0
  %594 = vmatprep.subr.bf16.mxu0 0
  %595 = vmatpush1.bf16.xpose.msra.mxu0 0
  %596 = vmatprep.subr.bf16.mxu0 0
  %597 = vmatpush1.bf16.xpose.msra.mxu0 0
  %598 = vmatprep.subr.bf16.mxu0 0
  %599 = vmatpush1.bf16.xpose.msra.mxu0 0
  %600 = vmatprep.mubr.bf16.mxu0 0
  %601 = vmatmul.mubr.bf16.gmra.mrb[0].mxu0 %v563
  %v602 = vpop.f32.mrb[0].mxu0
  %v603 = vadd.f32 %v16, %v602
  %v604 = vpop.f32.mrb[0].mxu0
  %v605 = vpop.f32.mrb[0].mxu0
  %v606 = vadd.f32 %v17, %v605
  %v607 = vpop.f32.mrb[0].mxu0
  %608 = vdwg.mxu0
  %v609 = vsel %vm255, %v603, -inf
  %610 = vmax.xlane.f32.xlu0 %v609
  %v611 = vpop.xlane.xlu0 %610
  %v612 = vsel %vm255, %v606, -inf
  %613 = vmax.xlane.f32.xlu0 %v612
  %v614 = vpop.xlane.xlu0 %613
  %v615 = vsub.f32 %v603, %v611
  %v616 = vsub.f32 %v606, %v614
  %v617 = vmul.f32 %v615, 1.442695
  %v618 = vpow.pop %v617
  %v619 = vmul.f32 %v616, 1.442695
  %v620 = vpow.pop %v619
  %v621 = vsel %vm255, %v618, 0.0
  %622 = vadd.xlane.f32.xlu0 %v621
  %v623 = vpop.xlane.xlu0 %622
  %v624 = vsel %vm255, %v620, 0.0
  %625 = vadd.xlane.f32.xlu0 %v624
  %v626 = vpop.xlane.xlu0 %625
  %v627 = vrcp.pop %v623
  %v628 = vrcp.pop %v626
  %v629 = vmul.f32 %v618, %v627
  %v630 = vmul.f32 %v620, %v628
  %v631 = vpack.c.bf16 %v630, %v629
  %v632 = vpack.c.bf16 %v557, %v554
  %v634 = vsel %vm255, %v631, 0
  %636 = vmatprep.subr.bf16.mxu0 0
  %637 = vmatpush1.bf16.msra.mxu0 %v632
  %638 = vmatprep.subr.bf16.mxu0 0
  %639 = vmatpush1.bf16.msra.mxu0 0
  %640 = vmatprep.subr.bf16.mxu0 0
  %641 = vmatpush1.bf16.msra.mxu0 0
  %642 = vmatprep.subr.bf16.mxu0 0
  %643 = vmatpush1.bf16.msra.mxu0 0
  %644 = vmatprep.subr.bf16.mxu0 0
  %645 = vmatpush1.bf16.msra.mxu0 0
  %646 = vmatprep.subr.bf16.mxu0 0
  %647 = vmatpush1.bf16.msra.mxu0 0
  %648 = vmatprep.subr.bf16.mxu0 0
  %649 = vmatpush1.bf16.msra.mxu0 0
  %650 = vmatprep.subr.bf16.mxu0 0
  %651 = vmatpush1.bf16.msra.mxu0 0
  %652 = vmatprep.subr.bf16.mxu0 0
  %653 = vmatpush1.bf16.msra.mxu0 0
  %654 = vmatprep.subr.bf16.mxu0 0
  %655 = vmatpush1.bf16.msra.mxu0 0
  %656 = vmatprep.subr.bf16.mxu0 0
  %657 = vmatpush1.bf16.msra.mxu0 0
  %658 = vmatprep.subr.bf16.mxu0 0
  %659 = vmatpush1.bf16.msra.mxu0 0
  %660 = vmatprep.subr.bf16.mxu0 0
  %661 = vmatpush1.bf16.msra.mxu0 0
  %662 = vmatprep.subr.bf16.mxu0 0
  %663 = vmatpush1.bf16.msra.mxu0 0
  %664 = vmatprep.subr.bf16.mxu0 0
  %665 = vmatpush1.bf16.msra.mxu0 0
  %666 = vmatprep.subr.bf16.mxu0 0
  %667 = vmatpush1.bf16.msra.mxu0 0
  %668 = vmatprep.mubr.bf16.mxu0 0
  %669 = vmatmul.mubr.bf16.gmra.mrb[0].mxu0 %v634
  %v670 = vpop.f32.mrb[0].mxu0
  %v671 = vadd.f32 0.0, %v670
  %v672 = vpop.f32.mrb[0].mxu0
  %v673 = vpop.f32.mrb[0].mxu0
  %v674 = vadd.f32 0.0, %v673
  %v675 = vpop.f32.mrb[0].mxu0
  %676 = vdwg.mxu0
  %v677 = vpack.c.bf16 %v674, %v671
  %v678 = vld [vmem:[%s1 + $0x68] sm:$0xf]
  %v679 = vld [vmem:[%s1 + $0x6c] sm:$0xf]
  %v682 = vunpack.c.l.b16 %v678
  %v683 = vunpack.c.l.b16 %v679
  %v684 = vpack.c.b16 %v683, %v682
  %v687 = vsel %vm255, %v677, 0
  %689 = vmatprep.subr.bf16.mxu0 0
  %690 = vmatpush1.bf16.msra.mxu0 %v684
  %691 = vmatprep.subr.bf16.mxu0 0
  %692 = vmatpush1.bf16.msra.mxu0 0
  %693 = vmatprep.subr.bf16.mxu0 0
  %694 = vmatpush1.bf16.msra.mxu0 0
  %695 = vmatprep.subr.bf16.mxu0 0
  %696 = vmatpush1.bf16.msra.mxu0 0
  %697 = vmatprep.subr.bf16.mxu0 0
  %698 = vmatpush1.bf16.msra.mxu0 0
  %699 = vmatprep.subr.bf16.mxu0 0
  %700 = vmatpush1.bf16.msra.mxu0 0
  %701 = vmatprep.subr.bf16.mxu0 0
  %702 = vmatpush1.bf16.msra.mxu0 0
  %703 = vmatprep.subr.bf16.mxu0 0
  %704 = vmatpush1.bf16.msra.mxu0 0
  %705 = vmatprep.subr.bf16.mxu0 0
  %706 = vmatpush1.bf16.msra.mxu0 0
  %707 = vmatprep.subr.bf16.mxu0 0
  %708 = vmatpush1.bf16.msra.mxu0 0
  %709 = vmatprep.subr.bf16.mxu0 0
  %710 = vmatpush1.bf16.msra.mxu0 0
  %711 = vmatprep.subr.bf16.mxu0 0
  %712 = vmatpush1.bf16.msra.mxu0 0
  %713 = vmatprep.subr.bf16.mxu0 0
  %714 = vmatpush1.bf16.msra.mxu0 0
  %715 = vmatprep.subr.bf16.mxu0 0
  %716 = vmatpush1.bf16.msra.mxu0 0
  %717 = vmatprep.subr.bf16.mxu0 0
  %718 = vmatpush1.bf16.msra.mxu0 0
  %719 = vmatprep.subr.bf16.mxu0 0
  %720 = vmatpush1.bf16.msra.mxu0 0
  %721 = vmatprep.mubr.bf16.mxu0 0
  %722 = vmatmul.mubr.bf16.gmra.mrb[0].mxu0 %v687
  %v723 = vpop.f32.mrb[0].mxu0
  %v724 = vadd.f32 0.0, %v723
  %v725 = vpop.f32.mrb[0].mxu0
  %v726 = vpop.f32.mrb[0].mxu0
  %v727 = vadd.f32 0.0, %v726
  %v728 = vpop.f32.mrb[0].mxu0
  %729 = vdwg.mxu0
  %v732 = vunpack.c.l.b16 %v372
  %v733 = vunpack.c.l.b16 %v373
  %v734 = vpack.c.b16 %v733, %v732
  %v737 = vsel %vm255, %v371, 0
  %739 = vmatprep.subr.bf16.mxu0 0
  %740 = vmatpush1.bf16.msra.mxu0 %v734
  %741 = vmatprep.subr.bf16.mxu0 0
  %742 = vmatpush1.bf16.msra.mxu0 0
  %743 = vmatprep.subr.bf16.mxu0 0
  %744 = vmatpush1.bf16.msra.mxu0 0
  %745 = vmatprep.subr.bf16.mxu0 0
  %746 = vmatpush1.bf16.msra.mxu0 0
  %747 = vmatprep.subr.bf16.mxu0 0
  %748 = vmatpush1.bf16.msra.mxu0 0
  %749 = vmatprep.subr.bf16.mxu0 0
  %750 = vmatpush1.bf16.msra.mxu0 0
  %751 = vmatprep.subr.bf16.mxu0 0
  %752 = vmatpush1.bf16.msra.mxu0 0
  %753 = vmatprep.subr.bf16.mxu0 0
  %754 = vmatpush1.bf16.msra.mxu0 0
  %755 = vmatprep.subr.bf16.mxu0 0
  %756 = vmatpush1.bf16.msra.mxu0 0
  %757 = vmatprep.subr.bf16.mxu0 0
  %758 = vmatpush1.bf16.msra.mxu0 0
  %759 = vmatprep.subr.bf16.mxu0 0
  %760 = vmatpush1.bf16.msra.mxu0 0
  %761 = vmatprep.subr.bf16.mxu0 0
  %762 = vmatpush1.bf16.msra.mxu0 0
  %763 = vmatprep.subr.bf16.mxu0 0
  %764 = vmatpush1.bf16.msra.mxu0 0
  %765 = vmatprep.subr.bf16.mxu0 0
  %766 = vmatpush1.bf16.msra.mxu0 0
  %767 = vmatprep.subr.bf16.mxu0 0
  %768 = vmatpush1.bf16.msra.mxu0 0
  %769 = vmatprep.subr.bf16.mxu0 0
  %770 = vmatpush1.bf16.msra.mxu0 0
  %771 = vmatprep.mubr.bf16.mxu0 0
  %772 = vmatmul.mubr.bf16.gmra.mrb[0].mxu0 %v737
  %v773 = vpop.f32.mrb[0].mxu0
  %v774 = vadd.f32 %v724, %v773
  %v775 = vpop.f32.mrb[0].mxu0
  %v776 = vpop.f32.mrb[0].mxu0
  %v777 = vadd.f32 %v727, %v776
  %v778 = vpop.f32.mrb[0].mxu0
  %779 = vdwg.mxu0
  %v780 = vld [vmem:[%s0 + $0x38] sm:$0x1]
  %v781 = vlaneseq
  %v782 = vshrl.u32 %v781, 7
  %v783 = vsub.s32 0, %v782
  %v784 = vrot.slane %v780, %v783
  %v785 = vadd.f32 %v774, %v784
  %v786 = vadd.f32 %v777, %v784
  %v787 = vadd.f32 %v785, %v61
  %v788 = vadd.f32 %v786, %v62
  %v789 = vsel %vm18, %v787, 0.0
  %790 = vadd.xlane.f32.xlu0 %v789
  %v791 = vpop.xlane.xlu0 %790
  %v792 = vsel %vm18, %v788, 0.0
  %793 = vadd.xlane.f32.xlu0 %v792
  %v794 = vpop.xlane.xlu0 %793
  %v795 = vmul.f32 %v787, %v787
  %v796 = vmul.f32 %v788, %v788
  %v797 = vsel %vm18, %v795, 0.0
  %798 = vadd.xlane.f32.xlu0 %v797
  %v799 = vpop.xlane.xlu0 %798
  %v800 = vsel %vm18, %v796, 0.0
  %801 = vadd.xlane.f32.xlu0 %v800
  %v802 = vpop.xlane.xlu0 %801
  %v803 = vmul.f32 %v791, 0.03125
  %v804 = vmul.f32 %v794, 0.03125
  %v805 = vmul.f32 %v799, 0.03125
  %v806 = vmul.f32 %v802, 0.03125
  %v807 = vmul.f32 %v803, %v803
  %v808 = vmul.f32 %v804, %v804
  %v809 = vsub.f32 %v805, %v807
  %v810 = vsub.f32 %v806, %v808
  %v811 = vsub.f32 %v787, %v803
  %v812 = vsub.f32 %v788, %v804
  %v813 = vadd.f32 %v809, 1e-12
  %v814 = vadd.f32 %v810, 1e-12
  %v815 = vrsqrt.pop %v813
  %v816 = vrsqrt.pop %v814
  %v817 = vmul.f32 %v811, %v815
  %v818 = vmul.f32 %v812, %v816
  %v819 = vld [vmem:[%s0 + $0x39] sm:$0x1]
  %v820 = vlaneseq
  %v821 = vshrl.u32 %v820, 7
  %v822 = vsub.s32 0, %v821
  %v823 = vrot.slane %v819, %v822
  %v824 = vmul.f32 %v817, %v823
  %v825 = vmul.f32 %v818, %v823
  %v826 = vld [vmem:[%s0 + $0x3a] sm:$0x1]
  %v827 = vlaneseq
  %v828 = vshrl.u32 %v827, 7
  %v829 = vsub.s32 0, %v828
  %v830 = vrot.slane %v826, %v829
  %v831 = vadd.f32 %v824, %v830
  %v832 = vadd.f32 %v825, %v830
  %v833 = vpack.c.bf16 %v832, %v831
  %v834 = vld [vmem:[%s1 + $0x70] sm:$0xf]
  %v835 = vld [vmem:[%s1 + $0x74] sm:$0xf]
  %v836 = vld [vmem:[%s1 + $0x78] sm:$0xf]
  %v837 = vld [vmem:[%s1 + $0x7c] sm:$0xf]
  %v838 = vld [vmem:[%s0 + $0x3b] sm:$0x1]
  %v839 = vlaneseq
  %v840 = vshrl.u32 %v839, 7
  %v841 = vsub.s32 0, %v840
  %v842 = vrot.slane %v838, %v841
  %v847 = vunpack.c.l.b16 %v834
  %v848 = vunpack.c.l.b16 %v835
  %v849 = vunpack.c.l.b16 %v836
  %v850 = vunpack.c.l.b16 %v837
  %v851 = vpack.c.b16 %v848, %v847
  %v852 = vpack.c.b16 %v850, %v849
  %v856 = vsel %vm18, %v833, 0
  %858 = vmatprep.subr.bf16.mxu0 0
  %859 = vmatpush1.bf16.msra.mxu0 %v851
  %860 = vmatprep.subr.bf16.mxu0 0
  %861 = vmatpush1.bf16.msra.mxu0 %v852
  %862 = vmatprep.subr.bf16.mxu0 0
  %863 = vmatpush1.bf16.msra.mxu0 0
  %864 = vmatprep.subr.bf16.mxu0 0
  %865 = vmatpush1.bf16.msra.mxu0 0
  %866 = vmatprep.subr.bf16.mxu0 0
  %867 = vmatpush1.bf16.msra.mxu0 0
  %868 = vmatprep.subr.bf16.mxu0 0
  %869 = vmatpush1.bf16.msra.mxu0 0
  %870 = vmatprep.subr.bf16.mxu0 0
  %871 = vmatpush1.bf16.msra.mxu0 0
  %872 = vmatprep.subr.bf16.mxu0 0
  %873 = vmatpush1.bf16.msra.mxu0 0
  %874 = vmatprep.subr.bf16.mxu0 0
  %875 = vmatpush1.bf16.msra.mxu0 0
  %876 = vmatprep.subr.bf16.mxu0 0
  %877 = vmatpush1.bf16.msra.mxu0 0
  %878 = vmatprep.subr.bf16.mxu0 0
  %879 = vmatpush1.bf16.msra.mxu0 0
  %880 = vmatprep.subr.bf16.mxu0 0
  %881 = vmatpush1.bf16.msra.mxu0 0
  %882 = vmatprep.subr.bf16.mxu0 0
  %883 = vmatpush1.bf16.msra.mxu0 0
  %884 = vmatprep.subr.bf16.mxu0 0
  %885 = vmatpush1.bf16.msra.mxu0 0
  %886 = vmatprep.subr.bf16.mxu0 0
  %887 = vmatpush1.bf16.msra.mxu0 0
  %888 = vmatprep.subr.bf16.mxu0 0
  %889 = vmatpush1.bf16.msra.mxu0 0
  %890 = vmatprep.mubr.bf16.mxu0 0
  %891 = vmatmul.mubr.bf16.gmra.mrb[0].mxu0 %v856
  %v892 = vpop.f32.mrb[0].mxu0
  %v893 = vadd.f32 %v842, %v892
  %v894 = vpop.f32.mrb[0].mxu0
  %v895 = vpop.f32.mrb[0].mxu0
  %v896 = vadd.f32 %v842, %v895
  %v897 = vpop.f32.mrb[0].mxu0
  %898 = vdwg.mxu0
  %v899 = vmul.f32 %v893, 0.5
  %v900 = vmul.f32 %v896, 0.5
  %v901 = vmul.f32 %v893, 0.044715
  %v902 = vmul.f32 %v896, 0.044715
  %v903 = vmul.f32 %v901, %v893
  %v904 = vmul.f32 %v902, %v896
  %v905 = vmul.f32 %v903, %v893
  %v906 = vmul.f32 %v904, %v896
  %v907 = vadd.f32 %v893, %v905
  %v908 = vadd.f32 %v896, %v906
  %v909 = vmul.f32 %v907, 0.7978846
  %v910 = vmul.f32 %v908, 0.7978846
  %v911 = vtanh.pop %v909
  %v912 = vtanh.pop %v910
  %v913 = vadd.f32 %v911, 1.0
  %v914 = vadd.f32 %v912, 1.0
  %v915 = vmul.f32 %v899, %v913
  %v916 = vmul.f32 %v900, %v914
  %v917 = vpack.c.bf16 %v916, %v915
  %v918 = vld [vmem:[%s1 + $0x80] sm:$0xf]
  %v919 = vld [vmem:[%s1 + $0x84] sm:$0xf]
  %v920 = vld [vmem:[%s1 + $0x88] sm:$0xf]
  %v921 = vld [vmem:[%s1 + $0x8c] sm:$0xf]
  %v922 = vld [vmem:[%s1 + $0x90] sm:$0xf]
  %v923 = vld [vmem:[%s1 + $0x94] sm:$0xf]
  %v924 = vld [vmem:[%s1 + $0x98] sm:$0xf]
  %v925 = vld [vmem:[%s1 + $0x9c] sm:$0xf]
  %v926 = vld [vmem:[%s0 + $0x3c] sm:$0x1]
  %v927 = vlaneseq
  %v928 = vshrl.u32 %v927, 7
  %v929 = vsub.s32 0, %v928
  %v930 = vrot.slane %v926, %v929
  %v939 = vunpack.c.l.b16 %v918
  %v940 = vunpack.c.l.b16 %v919
  %v941 = vunpack.c.l.b16 %v920
  %v942 = vunpack.c.l.b16 %v921
  %v943 = vunpack.c.l.b16 %v922
  %v944 = vunpack.c.l.b16 %v923
  %v945 = vunpack.c.l.b16 %v924
  %v946 = vunpack.c.l.b16 %v925
  %v947 = vpack.c.b16 %v940, %v939
  %v948 = vpack.c.b16 %v942, %v941
  %v949 = vpack.c.b16 %v944, %v943
  %v950 = vpack.c.b16 %v946, %v945
  %vm955 = vcmask 523264
  %v957 = vsel %vm955, %v917, 0
  %959 = vmatprep.subr.bf16.mxu0 0
  %960 = vmatpush1.bf16.msra.mxu0 %v947
  %961 = vmatprep.subr.bf16.mxu0 0
  %962 = vmatpush1.bf16.msra.mxu0 %v948
  %963 = vmatprep.subr.bf16.mxu0 0
  %964 = vmatpush1.bf16.msra.mxu0 %v949
  %965 = vmatprep.subr.bf16.mxu0 0
  %966 = vmatpush1.bf16.msra.mxu0 %v950
  %967 = vmatprep.subr.bf16.mxu0 0
  %968 = vmatpush1.bf16.msra.mxu0 0
  %969 = vmatprep.subr.bf16.mxu0 0
  %970 = vmatpush1.bf16.msra.mxu0 0
  %971 = vmatprep.subr.bf16.mxu0 0
  %972 = vmatpush1.bf16.msra.mxu0 0
  %973 = vmatprep.subr.bf16.mxu0 0
  %974 = vmatpush1.bf16.msra.mxu0 0
  %975 = vmatprep.subr.bf16.mxu0 0
  %976 = vmatpush1.bf16.msra.mxu0 0
  %977 = vmatprep.subr.bf16.mxu0 0
  %978 = vmatpush1.bf16.msra.mxu0 0
  %979 = vmatprep.subr.bf16.mxu0 0
  %980 = vmatpush1.bf16.msra.mxu0 0
  %981 = vmatprep.subr.bf16.mxu0 0
  %982 = vmatpush1.bf16.msra.mxu0 0
  %983 = vmatprep.subr.bf16.mxu0 0
  %984 = vmatpush1.bf16.msra.mxu0 0
  %985 = vmatprep.subr.bf16.mxu0 0
  %986 = vmatpush1.bf16.msra.mxu0 0
  %987 = vmatprep.subr.bf16.mxu0 0
  %988 = vmatpush1.bf16.msra.mxu0 0
  %989 = vmatprep.subr.bf16.mxu0 0
  %990 = vmatpush1.bf16.msra.mxu0 0
  %991 = vmatprep.mubr.bf16.mxu0 0
  %992 = vmatmul.mubr.bf16.gmra.mrb[0].mxu0 %v957
  %v993 = vpop.f32.mrb[0].mxu0
  %v994 = vadd.f32 %v930, %v993
  %v995 = vpop.f32.mrb[0].mxu0
  %v996 = vpop.f32.mrb[0].mxu0
  %v997 = vadd.f32 %v930, %v996
  %v998 = vpop.f32.mrb[0].mxu0
  %999 = vdwg.mxu0
  %v1000 = vadd.f32 %v994, %v831
  %v1001 = vadd.f32 %v997, %v832
  %v1002 = vsel %vm18, %v1000, 0.0
  %1003 = vadd.xlane.f32.xlu0 %v1002
  %v1004 = vpop.xlane.xlu0 %1003
  %v1005 = vsel %vm18, %v1001, 0.0
  %1006 = vadd.xlane.f32.xlu0 %v1005
  %v1007 = vpop.xlane.xlu0 %1006
  %v1008 = vmul.f32 %v1000, %v1000
  %v1009 = vmul.f32 %v1001, %v1001
  %v1010 = vsel %vm18, %v1008, 0.0
  %1011 = vadd.xlane.f32.xlu0 %v1010
  %v1012 = vpop.xlane.xlu0 %1011
  %v1013 = vsel %vm18, %v1009, 0.0
  %1014 = vadd.xlane.f32.xlu0 %v1013
  %v1015 = vpop.xlane.xlu0 %1014
  %v1016 = vmul.f32 %v1004, 0.03125
  %v1017 = vmul.f32 %v1007, 0.03125
  %v1018 = vmul.f32 %v1012, 0.03125
  %v1019 = vmul.f32 %v1015, 0.03125
  %v1020 = vmul.f32 %v1016, %v1016
  %v1021 = vmul.f32 %v1017, %v1017
  %v1022 = vsub.f32 %v1018, %v1020
  %v1023 = vsub.f32 %v1019, %v1021
  %v1024 = vsub.f32 %v1000, %v1016
  %v1025 = vsub.f32 %v1001, %v1017
  %v1026 = vadd.f32 %v1022, 1e-12
  %v1027 = vadd.f32 %v1023, 1e-12
  %v1028 = vrsqrt.pop %v1026
  %v1029 = vrsqrt.pop %v1027
  %v1030 = vmul.f32 %v1024, %v1028
  %v1031 = vmul.f32 %v1025, %v1029
  %v1032 = vld [vmem:[%s0 + $0x3d] sm:$0x1]
  %v1033 = vlaneseq
  %v1034 = vshrl.u32 %v1033, 7
  %v1035 = vsub.s32 0, %v1034
  %v1036 = vrot.slane %v1032, %v1035
  %v1037 = vmul.f32 %v1030, %v1036
  %v1038 = vmul.f32 %v1031, %v1036
  %v1039 = vld [vmem:[%s0 + $0x3e] sm:$0x1]
  %v1040 = vlaneseq
  %v1041 = vshrl.u32 %v1040, 7
  %v1042 = vsub.s32 0, %v1041
  %v1043 = vrot.slane %v1039, %v1042
  %v1044 = vadd.f32 %v1037, %v1043
  %v1045 = vadd.f32 %v1038, %v1043
  %v1046 = vpack.c.bf16 %v1045, %v1044
  %v1047 = vld [vmem:[%s1 + $0xa0] sm:$0xf]
  %v1048 = vld [vmem:[%s1 + $0xa4] sm:$0xf]
  %v1049 = vld [vmem:[%s1 + $0xa8] sm:$0xf]
  %v1050 = vld [vmem:[%s1 + $0xac] sm:$0xf]
  %v1051 = vld [vmem:[%s0 + $0x3f] sm:$0x1]
  %v1052 = vlaneseq
  %v1053 = vshrl.u32 %v1052, 7
  %v1054 = vsub.s32 0, %v1053
  %v1055 = vrot.slane %v1051, %v1054
  %v1060 = vunpack.c.l.b16 %v1047
  %v1061 = vunpack.c.l.b16 %v1048
  %v1062 = vunpack.c.l.b16 %v1049
  %v1063 = vunpack.c.l.b16 %v1050
  %v1064 = vpack.c.b16 %v1061, %v1060
  %v1065 = vpack.c.b16 %v1063, %v1062
  %v1069 = vsel %vm18, %v1046, 0
  %1071 = vmatprep.subr.bf16.mxu0 0
  %1072 = vmatpush1.bf16.msra.mxu0 %v1064
  %1073 = vmatprep.subr.bf16.mxu0 0
  %1074 = vmatpush1.bf16.msra.mxu0 %v1065
  %1075 = vmatprep.subr.bf16.mxu0 0
  %1076 = vmatpush1.bf16.msra.mxu0 0
  %1077 = vmatprep.subr.bf16.mxu0 0
  %1078 = vmatpush1.bf16.msra.mxu0 0
  %1079 = vmatprep.subr.bf16.mxu0 0
  %1080 = vmatpush1.bf16.msra.mxu0 0
  %1081 = vmatprep.subr.bf16.mxu0 0
  %1082 = vmatpush1.bf16.msra.mxu0 0
  %1083 = vmatprep.subr.bf16.mxu0 0
  %1084 = vmatpush1.bf16.msra.mxu0 0
  %1085 = vmatprep.subr.bf16.mxu0 0
  %1086 = vmatpush1.bf16.msra.mxu0 0
  %1087 = vmatprep.subr.bf16.mxu0 0
  %1088 = vmatpush1.bf16.msra.mxu0 0
  %1089 = vmatprep.subr.bf16.mxu0 0
  %1090 = vmatpush1.bf16.msra.mxu0 0
  %1091 = vmatprep.subr.bf16.mxu0 0
  %1092 = vmatpush1.bf16.msra.mxu0 0
  %1093 = vmatprep.subr.bf16.mxu0 0
  %1094 = vmatpush1.bf16.msra.mxu0 0
  %1095 = vmatprep.subr.bf16.mxu0 0
  %1096 = vmatpush1.bf16.msra.mxu0 0
  %1097 = vmatprep.subr.bf16.mxu0 0
  %1098 = vmatpush1.bf16.msra.mxu0 0
  %1099 = vmatprep.subr.bf16.mxu0 0
  %1100 = vmatpush1.bf16.msra.mxu0 0
  %1101 = vmatprep.subr.bf16.mxu0 0
  %1102 = vmatpush1.bf16.msra.mxu0 0
  %1103 = vmatprep.mubr.bf16.mxu0 0
  %1104 = vmatmul.mubr.bf16.gmra.mrb[0].mxu0 %v1069
  %v1105 = vpop.f32.mrb[0].mxu0
  %v1106 = vadd.f32 %v1055, %v1105
  %v1107 = vpop.f32.mrb[0].mxu0
  %v1108 = vpop.f32.mrb[0].mxu0
  %v1109 = vadd.f32 %v1055, %v1108
  %v1110 = vpop.f32.mrb[0].mxu0
  %1111 = vdwg.mxu0
  %v1112 = vld [vmem:[%s1 + $0xb0] sm:$0xf]
  %v1113 = vld [vmem:[%s1 + $0xb4] sm:$0xf]
  %v1114 = vld [vmem:[%s1 + $0xb8] sm:$0xf]
  %v1115 = vld [vmem:[%s1 + $0xbc] sm:$0xf]
  %v1116 = vld [vmem:[%s0 + $0x40] sm:$0x1]
  %v1117 = vlaneseq
  %v1118 = vshrl.u32 %v1117, 7
  %v1119 = vsub.s32 0, %v1118
  %v1120 = vrot.slane %v1116, %v1119
  %v1125 = vunpack.c.l.b16 %v1112
  %v1126 = vunpack.c.l.b16 %v1113
  %v1127 = vunpack.c.l.b16 %v1114
  %v1128 = vunpack.c.l.b16 %v1115
  %v1129 = vpack.c.b16 %v1126, %v1125
  %v1130 = vpack.c.b16 %v1128, %v1127
  %1133 = vmatprep.subr.bf16.mxu0 0
  %1134 = vmatpush1.bf16.msra.mxu0 %v1129
  %1135 = vmatprep.subr.bf16.mxu0 0
  %1136 = vmatpush1.bf16.msra.mxu0 %v1130
  %1137 = vmatprep.subr.bf16.mxu0 0
  %1138 = vmatpush1.bf16.msra.mxu0 0
  %1139 = vmatprep.subr.bf16.mxu0 0
  %1140 = vmatpush1.bf16.msra.mxu0 0
  %1141 = vmatprep.subr.bf16.mxu0 0
  %1142 = vmatpush1.bf16.msra.mxu0 0
  %1143 = vmatprep.subr.bf16.mxu0 0
  %1144 = vmatpush1.bf16.msra.mxu0 0
  %1145 = vmatprep.subr.bf16.mxu0 0
  %1146 = vmatpush1.bf16.msra.mxu0 0
  %1147 = vmatprep.subr.bf16.mxu0 0
  %1148 = vmatpush1.bf16.msra.mxu0 0
  %1149 = vmatprep.subr.bf16.mxu0 0
  %1150 = vmatpush1.bf16.msra.mxu0 0
  %1151 = vmatprep.subr.bf16.mxu0 0
  %1152 = vmatpush1.bf16.msra.mxu0 0
  %1153 = vmatprep.subr.bf16.mxu0 0
  %1154 = vmatpush1.bf16.msra.mxu0 0
  %1155 = vmatprep.subr.bf16.mxu0 0
  %1156 = vmatpush1.bf16.msra.mxu0 0
  %1157 = vmatprep.subr.bf16.mxu0 0
  %1158 = vmatpush1.bf16.msra.mxu0 0
  %1159 = vmatprep.subr.bf16.mxu0 0
  %1160 = vmatpush1.bf16.msra.mxu0 0
  %1161 = vmatprep.subr.bf16.mxu0 0
  %1162 = vmatpush1.bf16.msra.mxu0 0
  %1163 = vmatprep.subr.bf16.mxu0 0
  %1164 = vmatpush1.bf16.msra.mxu0 0
  %1165 = vmatprep.mubr.bf16.mxu0 0
  %1166 = vmatmul.mubr.bf16.gmra.mrb[0].mxu0 %v1069
  %v1167 = vpop.f32.mrb[0].mxu0
  %v1168 = vadd.f32 %v1120, %v1167
  %v1169 = vpop.f32.mrb[0].mxu0
  %v1170 = vpop.f32.mrb[0].mxu0
  %v1171 = vadd.f32 %v1120, %v1170
  %v1172 = vpop.f32.mrb[0].mxu0
  %1173 = vdwg.mxu0
  %v1174 = vld [vmem:[%s1 + $0xc0] sm:$0xf]
  %v1175 = vld [vmem:[%s1 + $0xc4] sm:$0xf]
  %v1176 = vld [vmem:[%s1 + $0xc8] sm:$0xf]
  %v1177 = vld [vmem:[%s1 + $0xcc] sm:$0xf]
  %v1178 = vld [vmem:[%s0 + $0x41] sm:$0x1]
  %v1179 = vlaneseq
  %v1180 = vshrl.u32 %v1179, 7
  %v1181 = vsub.s32 0, %v1180
  %v1182 = vrot.slane %v1178, %v1181
  %v1187 = vunpack.c.l.b16 %v1174
  %v1188 = vunpack.c.l.b16 %v1175
  %v1189 = vunpack.c.l.b16 %v1176
  %v1190 = vunpack.c.l.b16 %v1177
  %v1191 = vpack.c.b16 %v1188, %v1187
  %v1192 = vpack.c.b16 %v1190, %v1189
  %1195 = vmatprep.subr.bf16.mxu0 0
  %1196 = vmatpush1.bf16.msra.mxu0 %v1191
  %1197 = vmatprep.subr.bf16.mxu0 0
  %1198 = vmatpush1.bf16.msra.mxu0 %v1192
  %1199 = vmatprep.subr.bf16.mxu0 0
  %1200 = vmatpush1.bf16.msra.mxu0 0
  %1201 = vmatprep.subr.bf16.mxu0 0
  %1202 = vmatpush1.bf16.msra.mxu0 0
  %1203 = vmatprep.subr.bf16.mxu0 0
  %1204 = vmatpush1.bf16.msra.mxu0 0
  %1205 = vmatprep.subr.bf16.mxu0 0
  %1206 = vmatpush1.bf16.msra.mxu0 0
  %1207 = vmatprep.subr.bf16.mxu0 0
  %1208 = vmatpush1.bf16.msra.mxu0 0
  %1209 = vmatprep.subr.bf16.mxu0 0
  %1210 = vmatpush1.bf16.msra.mxu0 0
  %1211 = vmatprep.subr.bf16.mxu0 0
  %1212 = vmatpush1.bf16.msra.mxu0 0
  %1213 = vmatprep.subr.bf16.mxu0 0
  %1214 = vmatpush1.bf16.msra.mxu0 0
  %1215 = vmatprep.subr.bf16.mxu0 0
  %1216 = vmatpush1.bf16.msra.mxu0 0
  %1217 = vmatprep.subr.bf16.mxu0 0
  %1218 = vmatpush1.bf16.msra.mxu0 0
  %1219 = vmatprep.subr.bf16.mxu0 0
  %1220 = vmatpush1.bf16.msra.mxu0 0
  %1221 = vmatprep.subr.bf16.mxu0 0
  %1222 = vmatpush1.bf16.msra.mxu0 0
  %1223 = vmatprep.subr.bf16.mxu0 0
  %1224 = vmatpush1.bf16.msra.mxu0 0
  %1225 = vmatprep.subr.bf16.mxu0 0
  %1226 = vmatpush1.bf16.msra.mxu0 0
  %1227 = vmatprep.mubr.bf16.mxu0 0
  %1228 = vmatmul.mubr.bf16.gmra.mrb[0].mxu0 %v1069
  %v1229 = vpop.f32.mrb[0].mxu0
  %v1230 = vadd.f32 %v1182, %v1229
  %v1231 = vpop.f32.mrb[0].mxu0
  %v1232 = vpop.f32.mrb[0].mxu0
  %v1233 = vadd.f32 %v1182, %v1232
  %v1234 = vpop.f32.mrb[0].mxu0
  %1235 = vdwg.mxu0
  %v1236 = vpack.c.bf16 %v1109, %v1106
  %v1237 = vpack.c.bf16 %v1171, %v1168
  %v1239 = vsel %vm255, %v1236, 0
  %v1242 = vsel %vm255, %v1237, 0
  %1244 = vmatprep.subr.bf16.mxu0 0
  %1245 = vmatpush1.bf16.xpose.msra.mxu0 %v1242
  %1246 = vmatprep.subr.bf16.mxu0 0
  %1247 = vmatpush1.bf16.xpose.msra.mxu0 0
  %1248 = vmatprep.subr.bf16.mxu0 0
  %1249 = vmatpush1.bf16.xpose.msra.mxu0 0
  %1250 = vmatprep.subr.bf16.mxu0 0
  %1251 = vmatpush1.bf16.xpose.msra.mxu0 0
  %1252 = vmatprep.subr.bf16.mxu0 0
  %1253 = vmatpush1.bf16.xpose.msra.mxu0 0
  %1254 = vmatprep.subr.bf16.mxu0 0
  %1255 = vmatpush1.bf16.xpose.msra.mxu0 0
  %1256 = vmatprep.subr.bf16.mxu0 0
  %1257 = vmatpush1.bf16.xpose.msra.mxu0 0
  %1258 = vmatprep.subr.bf16.mxu0 0
  %1259 = vmatpush1.bf16.xpose.msra.mxu0 0
  %1260 = vmatprep.subr.bf16.mxu0 0
  %1261 = vmatpush1.bf16.xpose.msra.mxu0 0
  %1262 = vmatprep.subr.bf16.mxu0 0
  %1263 = vmatpush1.bf16.xpose.msra.mxu0 0
  %1264 = vmatprep.subr.bf16.mxu0 0
  %1265 = vmatpush1.bf16.xpose.msra.mxu0 0
  %1266 = vmatprep.subr.bf16.mxu0 0
  %1267 = vmatpush1.bf16.xpose.msra.mxu0 0
  %1268 = vmatprep.subr.bf16.mxu0 0
  %1269 = vmatpush1.bf16.xpose.msra.mxu0 0
  %1270 = vmatprep.subr.bf16.mxu0 0
  %1271 = vmatpush1.bf16.xpose.msra.mxu0 0
  %1272 = vmatprep.subr.bf16.mxu0 0
  %1273 = vmatpush1.bf16.xpose.msra.mxu0 0
  %1274 = vmatprep.subr.bf16.mxu0 0
  %1275 = vmatpush1.bf16.xpose.msra.mxu0 0
  %1276 = vmatprep.mubr.bf16.mxu0 0
  %1277 = vmatmul.mubr.bf16.gmra.mrb[0].mxu0 %v1239
  %v1278 = vpop.f32.mrb[0].mxu0
  %v1279 = vadd.f32 %v16, %v1278
  %v1280 = vpop.f32.mrb[0].mxu0
  %v1281 = vpop.f32.mrb[0].mxu0
  %v1282 = vadd.f32 %v17, %v1281
  %v1283 = vpop.f32.mrb[0].mxu0
  %1284 = vdwg.mxu0
  %v1285 = vsel %vm255, %v1279, -inf
  %1286 = vmax.xlane.f32.xlu0 %v1285
  %v1287 = vpop.xlane.xlu0 %1286
  %v1288 = vsel %vm255, %v1282, -inf
  %1289 = vmax.xlane.f32.xlu0 %v1288
  %v1290 = vpop.xlane.xlu0 %1289
  %v1291 = vsub.f32 %v1279, %v1287
  %v1292 = vsub.f32 %v1282, %v1290
  %v1293 = vmul.f32 %v1291, 1.442695
  %v1294 = vpow.pop %v1293
  %v1295 = vmul.f32 %v1292, 1.442695
  %v1296 = vpow.pop %v1295
  %v1297 = vsel %vm255, %v1294, 0.0
  %1298 = vadd.xlane.f32.xlu0 %v1297
  %v1299 = vpop.xlane.xlu0 %1298
  %v1300 = vsel %vm255, %v1296, 0.0
  %1301 = vadd.xlane.f32.xlu0 %v1300
  %v1302 = vpop.xlane.xlu0 %1301
  %v1303 = vrcp.pop %v1299
  %v1304 = vrcp.pop %v1302
  %v1305 = vmul.f32 %v1294, %v1303
  %v1306 = vmul.f32 %v1296, %v1304
  %v1307 = vpack.c.bf16 %v1306, %v1305
  %v1308 = vpack.c.bf16 %v1233, %v1230
  %v1310 = vsel %vm255, %v1307, 0
  %1312 = vmatprep.subr.bf16.mxu0 0
  %1313 = vmatpush1.bf16.msra.mxu0 %v1308
  %1314 = vmatprep.subr.bf16.mxu0 0
  %1315 = vmatpush1.bf16.msra.mxu0 0
  %1316 = vmatprep.subr.bf16.mxu0 0
  %1317 = vmatpush1.bf16.msra.mxu0 0
  %1318 = vmatprep.subr.bf16.mxu0 0
  %1319 = vmatpush1.bf16.msra.mxu0 0
  %1320 = vmatprep.subr.bf16.mxu0 0
  %1321 = vmatpush1.bf16.msra.mxu0 0
  %1322 = vmatprep.subr.bf16.mxu0 0
  %1323 = vmatpush1.bf16.msra.mxu0 0
  %1324 = vmatprep.subr.bf16.mxu0 0
  %1325 = vmatpush1.bf16.msra.mxu0 0
  %1326 = vmatprep.subr.bf16.mxu0 0
  %1327 = vmatpush1.bf16.msra.mxu0 0
  %1328 = vmatprep.subr.bf16.mxu0 0
  %1329 = vmatpush1.bf16.msra.mxu0 0
  %1330 = vmatprep.subr.bf16.mxu0 0
  %1331 = vmatpush1.bf16.msra.mxu0 0
  %1332 = vmatprep.subr.bf16.mxu0 0
  %1333 = vmatpush1.bf16.msra.mxu0 0
  %1334 = vmatprep.subr.bf16.mxu0 0
  %1335 = vmatpush1.bf16.msra.mxu0 0
  %1336 = vmatprep.subr.bf16.mxu0 0
  %1337 = vmatpush1.bf16.msra.mxu0 0
  %1338 = vmatprep.subr.bf16.mxu0 0
  %1339 = vmatpush1.bf16.msra.mxu0 0
  %1340 = vmatprep.subr.bf16.mxu0 0
  %1341 = vmatpush1.bf16.msra.mxu0 0
  %1342 = vmatprep.subr.bf16.mxu0 0
  %1343 = vmatpush1.bf16.msra.mxu0 0
  %1344 = vmatprep.mubr.bf16.mxu0 0
  %1345 = vmatmul.mubr.bf16.gmra.mrb[0].mxu0 %v1310
  %v1346 = vpop.f32.mrb[0].mxu0
  %v1347 = vadd.f32 0.0, %v1346
  %v1348 = vpop.f32.mrb[0].mxu0
  %v1349 = vpop.f32.mrb[0].mxu0
  %v1350 = vadd.f32 0.0, %v1349
  %v1351 = vpop.f32.mrb[0].mxu0
  %1352 = vdwg.mxu0
  %v1353 = vpack.c.bf16 %v1350, %v1347
  %v1354 = vld [vmem:[%s1 + $0x100] sm:$0xf]
  %v1355 = vld [vmem:[%s1 + $0x104] sm:$0xf]
  %v1356 = vld [vmem:[%s1 + $0xd0] sm:$0xf]
  %v1357 = vld [vmem:[%s1 + $0xd4] sm:$0xf]
  %v1358 = vld [vmem:[%s1 + $0xd8] sm:$0xf]
  %v1359 = vld [vmem:[%s1 + $0xdc] sm:$0xf]
  %v1360 = vld [vmem:[%s0 + $0x42] sm:$0x1]
  %v1361 = vlaneseq
  %v1362 = vshrl.u32 %v1361, 7
  %v1363 = vsub.s32 0, %v1362
  %v1364 = vrot.slane %v1360, %v1363
  %v1369 = vunpack.c.l.b16 %v1356
  %v1370 = vunpack.c.l.b16 %v1357
  %v1371 = vunpack.c.l.b16 %v1358
  %v1372 = vunpack.c.l.b16 %v1359
  %v1373 = vpack.c.b16 %v1370, %v1369
  %v1374 = vpack.c.b16 %v1372, %v1371
  %1377 = vmatprep.subr.bf16.mxu0 0
  %1378 = vmatpush1.bf16.msra.mxu0 %v1373
  %1379 = vmatprep.subr.bf16.mxu0 0
  %1380 = vmatpush1.bf16.msra.mxu0 %v1374
  %1381 = vmatprep.subr.bf16.mxu0 0
  %1382 = vmatpush1.bf16.msra.mxu0 0
  %1383 = vmatprep.subr.bf16.mxu0 0
  %1384 = vmatpush1.bf16.msra.mxu0 0
  %1385 = vmatprep.subr.bf16.mxu0 0
  %1386 = vmatpush1.bf16.msra.mxu0 0
  %1387 = vmatprep.subr.bf16.mxu0 0
  %1388 = vmatpush1.bf16.msra.mxu0 0
  %1389 = vmatprep.subr.bf16.mxu0 0
  %1390 = vmatpush1.bf16.msra.mxu0 0
  %1391 = vmatprep.subr.bf16.mxu0 0
  %1392 = vmatpush1.bf16.msra.mxu0 0
  %1393 = vmatprep.subr.bf16.mxu0 0
  %1394 = vmatpush1.bf16.msra.mxu0 0
  %1395 = vmatprep.subr.bf16.mxu0 0
  %1396 = vmatpush1.bf16.msra.mxu0 0
  %1397 = vmatprep.subr.bf16.mxu0 0
  %1398 = vmatpush1.bf16.msra.mxu0 0
  %1399 = vmatprep.subr.bf16.mxu0 0
  %1400 = vmatpush1.bf16.msra.mxu0 0
  %1401 = vmatprep.subr.bf16.mxu0 0
  %1402 = vmatpush1.bf16.msra.mxu0 0
  %1403 = vmatprep.subr.bf16.mxu0 0
  %1404 = vmatpush1.bf16.msra.mxu0 0
  %1405 = vmatprep.subr.bf16.mxu0 0
  %1406 = vmatpush1.bf16.msra.mxu0 0
  %1407 = vmatprep.subr.bf16.mxu0 0
  %1408 = vmatpush1.bf16.msra.mxu0 0
  %1409 = vmatprep.mubr.bf16.mxu0 0
  %1410 = vmatmul.mubr.bf16.gmra.mrb[0].mxu0 %v1069
  %v1411 = vpop.f32.mrb[0].mxu0
  %v1412 = vadd.f32 %v1364, %v1411
  %v1413 = vpop.f32.mrb[0].mxu0
  %v1414 = vpop.f32.mrb[0].mxu0
  %v1415 = vadd.f32 %v1364, %v1414
  %v1416 = vpop.f32.mrb[0].mxu0
  %1417 = vdwg.mxu0
  %v1418 = vld [vmem:[%s1 + $0xe0] sm:$0xf]
  %v1419 = vld [vmem:[%s1 + $0xe4] sm:$0xf]
  %v1420 = vld [vmem:[%s1 + $0xe8] sm:$0xf]
  %v1421 = vld [vmem:[%s1 + $0xec] sm:$0xf]
  %v1422 = vld [vmem:[%s0 + $0x43] sm:$0x1]
  %v1423 = vlaneseq
  %v1424 = vshrl.u32 %v1423, 7
  %v1425 = vsub.s32 0, %v1424
  %v1426 = vrot.slane %v1422, %v1425
  %v1431 = vunpack.c.l.b16 %v1418
  %v1432 = vunpack.c.l.b16 %v1419
  %v1433 = vunpack.c.l.b16 %v1420
  %v1434 = vunpack.c.l.b16 %v1421
  %v1435 = vpack.c.b16 %v1432, %v1431
  %v1436 = vpack.c.b16 %v1434, %v1433
  %1439 = vmatprep.subr.bf16.mxu0 0
  %1440 = vmatpush1.bf16.msra.mxu0 %v1435
  %1441 = vmatprep.subr.bf16.mxu0 0
  %1442 = vmatpush1.bf16.msra.mxu0 %v1436
  %1443 = vmatprep.subr.bf16.mxu0 0
  %1444 = vmatpush1.bf16.msra.mxu0 0
  %1445 = vmatprep.subr.bf16.mxu0 0
  %1446 = vmatpush1.bf16.msra.mxu0 0
  %1447 = vmatprep.subr.bf16.mxu0 0
  %1448 = vmatpush1.bf16.msra.mxu0 0
  %1449 = vmatprep.subr.bf16.mxu0 0
  %1450 = vmatpush1.bf16.msra.mxu0 0
  %1451 = vmatprep.subr.bf16.mxu0 0
  %1452 = vmatpush1.bf16.msra.mxu0 0
  %1453 = vmatprep.subr.bf16.mxu0 0
  %1454 = vmatpush1.bf16.msra.mxu0 0
  %1455 = vmatprep.subr.bf16.mxu0 0
  %1456 = vmatpush1.bf16.msra.mxu0 0
  %1457 = vmatprep.subr.bf16.mxu0 0
  %1458 = vmatpush1.bf16.msra.mxu0 0
  %1459 = vmatprep.subr.bf16.mxu0 0
  %1460 = vmatpush1.bf16.msra.mxu0 0
  %1461 = vmatprep.subr.bf16.mxu0 0
  %1462 = vmatpush1.bf16.msra.mxu0 0
  %1463 = vmatprep.subr.bf16.mxu0 0
  %1464 = vmatpush1.bf16.msra.mxu0 0
  %1465 = vmatprep.subr.bf16.mxu0 0
  %1466 = vmatpush1.bf16.msra.mxu0 0
  %1467 = vmatprep.subr.bf16.mxu0 0
  %1468 = vmatpush1.bf16.msra.mxu0 0
  %1469 = vmatprep.subr.bf16.mxu0 0
  %1470 = vmatpush1.bf16.msra.mxu0 0
  %1471 = vmatprep.mubr.bf16.mxu0 0
  %1472 = vmatmul.mubr.bf16.gmra.mrb[0].mxu0 %v1069
  %v1473 = vpop.f32.mrb[0].mxu0
  %v1474 = vadd.f32 %v1426, %v1473
  %v1475 = vpop.f32.mrb[0].mxu0
  %v1476 = vpop.f32.mrb[0].mxu0
  %v1477 = vadd.f32 %v1426, %v1476
  %v1478 = vpop.f32.mrb[0].mxu0
  %1479 = vdwg.mxu0
  %v1480 = vld [vmem:[%s1 + $0xf0] sm:$0xf]
  %v1481 = vld [vmem:[%s1 + $0xf4] sm:$0xf]
  %v1482 = vld [vmem:[%s1 + $0xf8] sm:$0xf]
  %v1483 = vld [vmem:[%s1 + $0xfc] sm:$0xf]
  %v1484 = vld [vmem:[%s0 + $0x44] sm:$0x1]
  %v1485 = vlaneseq
  %v1486 = vshrl.u32 %v1485, 7
  %v1487 = vsub.s32 0, %v1486
  %v1488 = vrot.slane %v1484, %v1487
  %v1493 = vunpack.c.l.b16 %v1480
  %v1494 = vunpack.c.l.b16 %v1481
  %v1495 = vunpack.c.l.b16 %v1482
  %v1496 = vunpack.c.l.b16 %v1483
  %v1497 = vpack.c.b16 %v1494, %v1493
  %v1498 = vpack.c.b16 %v1496, %v1495
  %1501 = vmatprep.subr.bf16.mxu0 0
  %1502 = vmatpush1.bf16.msra.mxu0 %v1497
  %1503 = vmatprep.subr.bf16.mxu0 0
  %1504 = vmatpush1.bf16.msra.mxu0 %v1498
  %1505 = vmatprep.subr.bf16.mxu0 0
  %1506 = vmatpush1.bf16.msra.mxu0 0
  %1507 = vmatprep.subr.bf16.mxu0 0
  %1508 = vmatpush1.bf16.msra.mxu0 0
  %1509 = vmatprep.subr.bf16.mxu0 0
  %1510 = vmatpush1.bf16.msra.mxu0 0
  %1511 = vmatprep.subr.bf16.mxu0 0
  %1512 = vmatpush1.bf16.msra.mxu0 0
  %1513 = vmatprep.subr.bf16.mxu0 0
  %1514 = vmatpush1.bf16.msra.mxu0 0
  %1515 = vmatprep.subr.bf16.mxu0 0
  %1516 = vmatpush1.bf16.msra.mxu0 0
  %1517 = vmatprep.subr.bf16.mxu0 0
  %1518 = vmatpush1.bf16.msra.mxu0 0
  %1519 = vmatprep.subr.bf16.mxu0 0
  %1520 = vmatpush1.bf16.msra.mxu0 0
  %1521 = vmatprep.subr.bf16.mxu0 0
  %1522 = vmatpush1.bf16.msra.mxu0 0
  %1523 = vmatprep.subr.bf16.mxu0 0
  %1524 = vmatpush1.bf16.msra.mxu0 0
  %1525 = vmatprep.subr.bf16.mxu0 0
  %1526 = vmatpush1.bf16.msra.mxu0 0
  %1527 = vmatprep.subr.bf16.mxu0 0
  %1528 = vmatpush1.bf16.msra.mxu0 0
  %1529 = vmatprep.subr.bf16.mxu0 0
  %1530 = vmatpush1.bf16.msra.mxu0 0
  %1531 = vmatprep.subr.bf16.mxu0 0
  %1532 = vmatpush1.bf16.msra.mxu0 0
  %1533 = vmatprep.mubr.bf16.mxu0 0
  %1534 = vmatmul.mubr.bf16.gmra.mrb[0].mxu0 %v1069
  %v1535 = vpop.f32.mrb[0].mxu0
  %v1536 = vadd.f32 %v1488, %v1535
  %v1537 = vpop.f32.mrb[0].mxu0
  %v1538 = vpop.f32.mrb[0].mxu0
  %v1539 = vadd.f32 %v1488, %v1538
  %v1540 = vpop.f32.mrb[0].mxu0
  %1541 = vdwg.mxu0
  %v1542 = vpack.c.bf16 %v1415, %v1412
  %v1543 = vpack.c.bf16 %v1477, %v1474
  %v1545 = vsel %vm255, %v1542, 0
  %v1548 = vsel %vm255, %v1543, 0
  %1550 = vmatprep.subr.bf16.mxu0 0
  %1551 = vmatpush1.bf16.xpose.msra.mxu0 %v1548
  %1552 = vmatprep.subr.bf16.mxu0 0
  %1553 = vmatpush1.bf16.xpose.msra.mxu0 0
  %1554 = vmatprep.subr.bf16.mxu0 0
  %1555 = vmatpush1.bf16.xpose.msra.mxu0 0
  %1556 = vmatprep.subr.bf16.mxu0 0
  %1557 = vmatpush1.bf16.xpose.msra.mxu0 0
  %1558 = vmatprep.subr.bf16.mxu0 0
  %1559 = vmatpush1.bf16.xpose.msra.mxu0 0
  %1560 = vmatprep.subr.bf16.mxu0 0
  %1561 = vmatpush1.bf16.xpose.msra.mxu0 0
  %1562 = vmatprep.subr.bf16.mxu0 0
  %1563 = vmatpush1.bf16.xpose.msra.mxu0 0
  %1564 = vmatprep.subr.bf16.mxu0 0
  %1565 = vmatpush1.bf16.xpose.msra.mxu0 0
  %1566 = vmatprep.subr.bf16.mxu0 0
  %1567 = vmatpush1.bf16.xpose.msra.mxu0 0
  %1568 = vmatprep.subr.bf16.mxu0 0
  %1569 = vmatpush1.bf16.xpose.msra.mxu0 0
  %1570 = vmatprep.subr.bf16.mxu0 0
  %1571 = vmatpush1.bf16.xpose.msra.mxu0 0
  %1572 = vmatprep.subr.bf16.mxu0 0
  %1573 = vmatpush1.bf16.xpose.msra.mxu0 0
  %1574 = vmatprep.subr.bf16.mxu0 0
  %1575 = vmatpush1.bf16.xpose.msra.mxu0 0
  %1576 = vmatprep.subr.bf16.mxu0 0
  %1577 = vmatpush1.bf16.xpose.msra.mxu0 0
  %1578 = vmatprep.subr.bf16.mxu0 0
  %1579 = vmatpush1.bf16.xpose.msra.mxu0 0
  %1580 = vmatprep.subr.bf16.mxu0 0
  %1581 = vmatpush1.bf16.xpose.msra.mxu0 0
  %1582 = vmatprep.mubr.bf16.mxu0 0
  %1583 = vmatmul.mubr.bf16.gmra.mrb[0].mxu0 %v1545
  %v1584 = vpop.f32.mrb[0].mxu0
  %v1585 = vadd.f32 %v16, %v1584
  %v1586 = vpop.f32.mrb[0].mxu0
  %v1587 = vpop.f32.mrb[0].mxu0
  %v1588 = vadd.f32 %v17, %v1587
  %v1589 = vpop.f32.mrb[0].mxu0
  %1590 = vdwg.mxu0
  %v1591 = vsel %vm255, %v1585, -inf
  %1592 = vmax.xlane.f32.xlu0 %v1591
  %v1593 = vpop.xlane.xlu0 %1592
  %v1594 = vsel %vm255, %v1588, -inf
  %1595 = vmax.xlane.f32.xlu0 %v1594
  %v1596 = vpop.xlane.xlu0 %1595
  %v1597 = vsub.f32 %v1585, %v1593
  %v1598 = vsub.f32 %v1588, %v1596
  %v1599 = vmul.f32 %v1597, 1.442695
  %v1600 = vpow.pop %v1599
  %v1601 = vmul.f32 %v1598, 1.442695
  %v1602 = vpow.pop %v1601
  %v1603 = vsel %vm255, %v1600, 0.0
  %1604 = vadd.xlane.f32.xlu0 %v1603
  %v1605 = vpop.xlane.xlu0 %1604
  %v1606 = vsel %vm255, %v1602, 0.0
  %1607 = vadd.xlane.f32.xlu0 %v1606
  %v1608 = vpop.xlane.xlu0 %1607
  %v1609 = vrcp.pop %v1605
  %v1610 = vrcp.pop %v1608
  %v1611 = vmul.f32 %v1600, %v1609
  %v1612 = vmul.f32 %v1602, %v1610
  %v1613 = vpack.c.bf16 %v1612, %v1611
  %v1614 = vpack.c.bf16 %v1539, %v1536
  %v1616 = vsel %vm255, %v1613, 0
  %1618 = vmatprep.subr.bf16.mxu0 0
  %1619 = vmatpush1.bf16.msra.mxu0 %v1614
  %1620 = vmatprep.subr.bf16.mxu0 0
  %1621 = vmatpush1.bf16.msra.mxu0 0
  %1622 = vmatprep.subr.bf16.mxu0 0
  %1623 = vmatpush1.bf16.msra.mxu0 0
  %1624 = vmatprep.subr.bf16.mxu0 0
  %1625 = vmatpush1.bf16.msra.mxu0 0
  %1626 = vmatprep.subr.bf16.mxu0 0
  %1627 = vmatpush1.bf16.msra.mxu0 0
  %1628 = vmatprep.subr.bf16.mxu0 0
  %1629 = vmatpush1.bf16.msra.mxu0 0
  %1630 = vmatprep.subr.bf16.mxu0 0
  %1631 = vmatpush1.bf16.msra.mxu0 0
  %1632 = vmatprep.subr.bf16.mxu0 0
  %1633 = vmatpush1.bf16.msra.mxu0 0
  %1634 = vmatprep.subr.bf16.mxu0 0
  %1635 = vmatpush1.bf16.msra.mxu0 0
  %1636 = vmatprep.subr.bf16.mxu0 0
  %1637 = vmatpush1.bf16.msra.mxu0 0
  %1638 = vmatprep.subr.bf16.mxu0 0
  %1639 = vmatpush1.bf16.msra.mxu0 0
  %1640 = vmatprep.subr.bf16.mxu0 0
  %1641 = vmatpush1.bf16.msra.mxu0 0
  %1642 = vmatprep.subr.bf16.mxu0 0
  %1643 = vmatpush1.bf16.msra.mxu0 0
  %1644 = vmatprep.subr.bf16.mxu0 0
  %1645 = vmatpush1.bf16.msra.mxu0 0
  %1646 = vmatprep.subr.bf16.mxu0 0
  %1647 = vmatpush1.bf16.msra.mxu0 0
  %1648 = vmatprep.subr.bf16.mxu0 0
  %1649 = vmatpush1.bf16.msra.mxu0 0
  %1650 = vmatprep.mubr.bf16.mxu0 0
  %1651 = vmatmul.mubr.bf16.gmra.mrb[0].mxu0 %v1616
  %v1652 = vpop.f32.mrb[0].mxu0
  %v1653 = vadd.f32 0.0, %v1652
  %v1654 = vpop.f32.mrb[0].mxu0
  %v1655 = vpop.f32.mrb[0].mxu0
  %v1656 = vadd.f32 0.0, %v1655
  %v1657 = vpop.f32.mrb[0].mxu0
  %1658 = vdwg.mxu0
  %v1659 = vpack.c.bf16 %v1656, %v1653
  %v1660 = vld [vmem:[%s1 + $0x108] sm:$0xf]
  %v1661 = vld [vmem:[%s1 + $0x10c] sm:$0xf]
  %v1664 = vunpack.c.l.b16 %v1660
  %v1665 = vunpack.c.l.b16 %v1661
  %v1666 = vpack.c.b16 %v1665, %v1664
  %v1669 = vsel %vm255, %v1659, 0
  %1671 = vmatprep.subr.bf16.mxu0 0
  %1672 = vmatpush1.bf16.msra.mxu0 %v1666
  %1673 = vmatprep.subr.bf16.mxu0 0
  %1674 = vmatpush1.bf16.msra.mxu0 0
  %1675 = vmatprep.subr.bf16.mxu0 0
  %1676 = vmatpush1.bf16.msra.mxu0 0
  %1677 = vmatprep.subr.bf16.mxu0 0
  %1678 = vmatpush1.bf16.msra.mxu0 0
  %1679 = vmatprep.subr.bf16.mxu0 0
  %1680 = vmatpush1.bf16.msra.mxu0 0
  %1681 = vmatprep.subr.bf16.mxu0 0
  %1682 = vmatpush1.bf16.msra.mxu0 0
  %1683 = vmatprep.subr.bf16.mxu0 0
  %1684 = vmatpush1.bf16.msra.mxu0 0
  %1685 = vmatprep.subr.bf16.mxu0 0
  %1686 = vmatpush1.bf16.msra.mxu0 0
  %1687 = vmatprep.subr.bf16.mxu0 0
  %1688 = vmatpush1.bf16.msra.mxu0 0
  %1689 = vmatprep.subr.bf16.mxu0 0
  %1690 = vmatpush1.bf16.msra.mxu0 0
  %1691 = vmatprep.subr.bf16.mxu0 0
  %1692 = vmatpush1.bf16.msra.mxu0 0
  %1693 = vmatprep.subr.bf16.mxu0 0
  %1694 = vmatpush1.bf16.msra.mxu0 0
  %1695 = vmatprep.subr.bf16.mxu0 0
  %1696 = vmatpush1.bf16.msra.mxu0 0
  %1697 = vmatprep.subr.bf16.mxu0 0
  %1698 = vmatpush1.bf16.msra.mxu0 0
  %1699 = vmatprep.subr.bf16.mxu0 0
  %1700 = vmatpush1.bf16.msra.mxu0 0
  %1701 = vmatprep.subr.bf16.mxu0 0
  %1702 = vmatpush1.bf16.msra.mxu0 0
  %1703 = vmatprep.mubr.bf16.mxu0 0
  %1704 = vmatmul.mubr.bf16.gmra.mrb[0].mxu0 %v1669
  %v1705 = vpop.f32.mrb[0].mxu0
  %v1706 = vadd.f32 0.0, %v1705
  %v1707 = vpop.f32.mrb[0].mxu0
  %v1708 = vpop.f32.mrb[0].mxu0
  %v1709 = vadd.f32 0.0, %v1708
  %v1710 = vpop.f32.mrb[0].mxu0
  %1711 = vdwg.mxu0
  %v1714 = vunpack.c.l.b16 %v1354
  %v1715 = vunpack.c.l.b16 %v1355
  %v1716 = vpack.c.b16 %v1715, %v1714
  %v1719 = vsel %vm255, %v1353, 0
  %1721 = vmatprep.subr.bf16.mxu0 0
  %1722 = vmatpush1.bf16.msra.mxu0 %v1716
  %1723 = vmatprep.subr.bf16.mxu0 0
  %1724 = vmatpush1.bf16.msra.mxu0 0
  %1725 = vmatprep.subr.bf16.mxu0 0
  %1726 = vmatpush1.bf16.msra.mxu0 0
  %1727 = vmatprep.subr.bf16.mxu0 0
  %1728 = vmatpush1.bf16.msra.mxu0 0
  %1729 = vmatprep.subr.bf16.mxu0 0
  %1730 = vmatpush1.bf16.msra.mxu0 0
  %1731 = vmatprep.subr.bf16.mxu0 0
  %1732 = vmatpush1.bf16.msra.mxu0 0
  %1733 = vmatprep.subr.bf16.mxu0 0
  %1734 = vmatpush1.bf16.msra.mxu0 0
  %1735 = vmatprep.subr.bf16.mxu0 0
  %1736 = vmatpush1.bf16.msra.mxu0 0
  %1737 = vmatprep.subr.bf16.mxu0 0
  %1738 = vmatpush1.bf16.msra.mxu0 0
  %1739 = vmatprep.subr.bf16.mxu0 0
  %1740 = vmatpush1.bf16.msra.mxu0 0
  %1741 = vmatprep.subr.bf16.mxu0 0
  %1742 = vmatpush1.bf16.msra.mxu0 0
  %1743 = vmatprep.subr.bf16.mxu0 0
  %1744 = vmatpush1.bf16.msra.mxu0 0
  %1745 = vmatprep.subr.bf16.mxu0 0
  %1746 = vmatpush1.bf16.msra.mxu0 0
  %1747 = vmatprep.subr.bf16.mxu0 0
  %1748 = vmatpush1.bf16.msra.mxu0 0
  %1749 = vmatprep.subr.bf16.mxu0 0
  %1750 = vmatpush1.bf16.msra.mxu0 0
  %1751 = vmatprep.subr.bf16.mxu0 0
  %1752 = vmatpush1.bf16.msra.mxu0 0
  %1753 = vmatprep.mubr.bf16.mxu0 0
  %1754 = vmatmul.mubr.bf16.gmra.mrb[0].mxu0 %v1719
  %v1755 = vpop.f32.mrb[0].mxu0
  %v1756 = vadd.f32 %v1706, %v1755
  %v1757 = vpop.f32.mrb[0].mxu0
  %v1758 = vpop.f32.mrb[0].mxu0
  %v1759 = vadd.f32 %v1709, %v1758
  %v1760 = vpop.f32.mrb[0].mxu0
  %1761 = vdwg.mxu0
  %v1762 = vld [vmem:[%s0 + $0x45] sm:$0x1]
  %v1763 = vlaneseq
  %v1764 = vshrl.u32 %v1763, 7
  %v1765 = vsub.s32 0, %v1764
  %v1766 = vrot.slane %v1762, %v1765
  %v1767 = vadd.f32 %v1756, %v1766
  %v1768 = vadd.f32 %v1759, %v1766
  %v1769 = vadd.f32 %v1767, %v1044
  %v1770 = vadd.f32 %v1768, %v1045
  %v1771 = vsel %vm18, %v1769, 0.0
  %1772 = vadd.xlane.f32.xlu0 %v1771
  %v1773 = vpop.xlane.xlu0 %1772
  %v1774 = vsel %vm18, %v1770, 0.0
  %1775 = vadd.xlane.f32.xlu0 %v1774
  %v1776 = vpop.xlane.xlu0 %1775
  %v1777 = vmul.f32 %v1769, %v1769
  %v1778 = vmul.f32 %v1770, %v1770
  %v1779 = vsel %vm18, %v1777, 0.0
  %1780 = vadd.xlane.f32.xlu0 %v1779
  %v1781 = vpop.xlane.xlu0 %1780
  %v1782 = vsel %vm18, %v1778, 0.0
  %1783 = vadd.xlane.f32.xlu0 %v1782
  %v1784 = vpop.xlane.xlu0 %1783
  %v1785 = vmul.f32 %v1773, 0.03125
  %v1786 = vmul.f32 %v1776, 0.03125
  %v1787 = vmul.f32 %v1781, 0.03125
  %v1788 = vmul.f32 %v1784, 0.03125
  %v1789 = vmul.f32 %v1785, %v1785
  %v1790 = vmul.f32 %v1786, %v1786
  %v1791 = vsub.f32 %v1787, %v1789
  %v1792 = vsub.f32 %v1788, %v1790
  %v1793 = vsub.f32 %v1769, %v1785
  %v1794 = vsub.f32 %v1770, %v1786
  %v1795 = vadd.f32 %v1791, 1e-12
  %v1796 = vadd.f32 %v1792, 1e-12
  %v1797 = vrsqrt.pop %v1795
  %v1798 = vrsqrt.pop %v1796
  %v1799 = vmul.f32 %v1793, %v1797
  %v1800 = vmul.f32 %v1794, %v1798
  %v1801 = vld [vmem:[%s0 + $0x46] sm:$0x1]
  %v1802 = vlaneseq
  %v1803 = vshrl.u32 %v1802, 7
  %v1804 = vsub.s32 0, %v1803
  %v1805 = vrot.slane %v1801, %v1804
  %v1806 = vmul.f32 %v1799, %v1805
  %v1807 = vmul.f32 %v1800, %v1805
  %v1808 = vld [vmem:[%s0 + $0x47] sm:$0x1]
  %v1809 = vlaneseq
  %v1810 = vshrl.u32 %v1809, 7
  %v1811 = vsub.s32 0, %v1810
  %v1812 = vrot.slane %v1808, %v1811
  %v1813 = vadd.f32 %v1806, %v1812
  %v1814 = vadd.f32 %v1807, %v1812
  %v1815 = vpack.c.bf16 %v1814, %v1813
  %v1816 = vld [vmem:[%s1 + $0x110] sm:$0xf]
  %v1817 = vld [vmem:[%s1 + $0x114] sm:$0xf]
  %v1818 = vld [vmem:[%s1 + $0x118] sm:$0xf]
  %v1819 = vld [vmem:[%s1 + $0x11c] sm:$0xf]
  %v1820 = vld [vmem:[%s0 + $0x48] sm:$0x1]
  %v1821 = vlaneseq
  %v1822 = vshrl.u32 %v1821, 7
  %v1823 = vsub.s32 0, %v1822
  %v1824 = vrot.slane %v1820, %v1823
  %v1829 = vunpack.c.l.b16 %v1816
  %v1830 = vunpack.c.l.b16 %v1817
  %v1831 = vunpack.c.l.b16 %v1818
  %v1832 = vunpack.c.l.b16 %v1819
  %v1833 = vpack.c.b16 %v1830, %v1829
  %v1834 = vpack.c.b16 %v1832, %v1831
  %v1838 = vsel %vm18, %v1815, 0
  %1840 = vmatprep.subr.bf16.mxu0 0
  %1841 = vmatpush1.bf16.msra.mxu0 %v1833
  %1842 = vmatprep.subr.bf16.mxu0 0
  %1843 = vmatpush1.bf16.msra.mxu0 %v1834
  %1844 = vmatprep.subr.bf16.mxu0 0
  %1845 = vmatpush1.bf16.msra.mxu0 0
  %1846 = vmatprep.subr.bf16.mxu0 0
  %1847 = vmatpush1.bf16.msra.mxu0 0
  %1848 = vmatprep.subr.bf16.mxu0 0
  %1849 = vmatpush1.bf16.msra.mxu0 0
  %1850 = vmatprep.subr.bf16.mxu0 0
  %1851 = vmatpush1.bf16.msra.mxu0 0
  %1852 = vmatprep.subr.bf16.mxu0 0
  %1853 = vmatpush1.bf16.msra.mxu0 0
  %1854 = vmatprep.subr.bf16.mxu0 0
  %1855 = vmatpush1.bf16.msra.mxu0 0
  %1856 = vmatprep.subr.bf16.mxu0 0
  %1857 = vmatpush1.bf16.msra.mxu0 0
  %1858 = vmatprep.subr.bf16.mxu0 0
  %1859 = vmatpush1.bf16.msra.mxu0 0
  %1860 = vmatprep.subr.bf16.mxu0 0
  %1861 = vmatpush1.bf16.msra.mxu0 0
  %1862 = vmatprep.subr.bf16.mxu0 0
  %1863 = vmatpush1.bf16.msra.mxu0 0
  %1864 = vmatprep.subr.bf16.mxu0 0
  %1865 = vmatpush1.bf16.msra.mxu0 0
  %1866 = vmatprep.subr.bf16.mxu0 0
  %1867 = vmatpush1.bf16.msra.mxu0 0
  %1868 = vmatprep.subr.bf16.mxu0 0
  %1869 = vmatpush1.bf16.msra.mxu0 0
  %1870 = vmatprep.subr.bf16.mxu0 0
  %1871 = vmatpush1.bf16.msra.mxu0 0
  %1872 = vmatprep.mubr.bf16.mxu0 0
  %1873 = vmatmul.mubr.bf16.gmra.mrb[0].mxu0 %v1838
  %v1874 = vpop.f32.mrb[0].mxu0
  %v1875 = vadd.f32 %v1824, %v1874
  %v1876 = vpop.f32.mrb[0].mxu0
  %v1877 = vpop.f32.mrb[0].mxu0
  %v1878 = vadd.f32 %v1824, %v1877
  %v1879 = vpop.f32.mrb[0].mxu0
  %1880 = vdwg.mxu0
  %v1881 = vmul.f32 %v1875, 0.5
  %v1882 = vmul.f32 %v1878, 0.5
  %v1883 = vmul.f32 %v1875, 0.044715
  %v1884 = vmul.f32 %v1878, 0.044715
  %v1885 = vmul.f32 %v1883, %v1875
  %v1886 = vmul.f32 %v1884, %v1878
  %v1887 = vmul.f32 %v1885, %v1875
  %v1888 = vmul.f32 %v1886, %v1878
  %v1889 = vadd.f32 %v1875, %v1887
  %v1890 = vadd.f32 %v1878, %v1888
  %v1891 = vmul.f32 %v1889, 0.7978846
  %v1892 = vmul.f32 %v1890, 0.7978846
  %v1893 = vtanh.pop %v1891
  %v1894 = vtanh.pop %v1892
  %v1895 = vadd.f32 %v1893, 1.0
  %v1896 = vadd.f32 %v1894, 1.0
  %v1897 = vmul.f32 %v1881, %v1895
  %v1898 = vmul.f32 %v1882, %v1896
  %v1899 = vpack.c.bf16 %v1898, %v1897
  %v1900 = vld [vmem:[%s1 + $0x120] sm:$0xf]
  %v1901 = vld [vmem:[%s1 + $0x124] sm:$0xf]
  %v1902 = vld [vmem:[%s1 + $0x128] sm:$0xf]
  %v1903 = vld [vmem:[%s1 + $0x12c] sm:$0xf]
  %v1904 = vld [vmem:[%s1 + $0x130] sm:$0xf]
  %v1905 = vld [vmem:[%s1 + $0x134] sm:$0xf]
  %v1906 = vld [vmem:[%s1 + $0x138] sm:$0xf]
  %v1907 = vld [vmem:[%s1 + $0x13c] sm:$0xf]
  %v1908 = vld [vmem:[%s0 + $0x49] sm:$0x1]
  %v1909 = vlaneseq
  %v1910 = vshrl.u32 %v1909, 7
  %v1911 = vsub.s32 0, %v1910
  %v1912 = vrot.slane %v1908, %v1911
  %v1921 = vunpack.c.l.b16 %v1900
  %v1922 = vunpack.c.l.b16 %v1901
  %v1923 = vunpack.c.l.b16 %v1902
  %v1924 = vunpack.c.l.b16 %v1903
  %v1925 = vunpack.c.l.b16 %v1904
  %v1926 = vunpack.c.l.b16 %v1905
  %v1927 = vunpack.c.l.b16 %v1906
  %v1928 = vunpack.c.l.b16 %v1907
  %v1929 = vpack.c.b16 %v1922, %v1921
  %v1930 = vpack.c.b16 %v1924, %v1923
  %v1931 = vpack.c.b16 %v1926, %v1925
  %v1932 = vpack.c.b16 %v1928, %v1927
  %v1938 = vsel %vm955, %v1899, 0
  %1940 = vmatprep.subr.bf16.mxu0 0
  %1941 = vmatpush1.bf16.msra.mxu0 %v1929
  %1942 = vmatprep.subr.bf16.mxu0 0
  %1943 = vmatpush1.bf16.msra.mxu0 %v1930
  %1944 = vmatprep.subr.bf16.mxu0 0
  %1945 = vmatpush1.bf16.msra.mxu0 %v1931
  %1946 = vmatprep.subr.bf16.mxu0 0
  %1947 = vmatpush1.bf16.msra.mxu0 %v1932
  %1948 = vmatprep.subr.bf16.mxu0 0
  %1949 = vmatpush1.bf16.msra.mxu0 0
  %1950 = vmatprep.subr.bf16.mxu0 0
  %1951 = vmatpush1.bf16.msra.mxu0 0
  %1952 = vmatprep.subr.bf16.mxu0 0
  %1953 = vmatpush1.bf16.msra.mxu0 0
  %1954 = vmatprep.subr.bf16.mxu0 0
  %1955 = vmatpush1.bf16.msra.mxu0 0
  %1956 = vmatprep.subr.bf16.mxu0 0
  %1957 = vmatpush1.bf16.msra.mxu0 0
  %1958 = vmatprep.subr.bf16.mxu0 0
  %1959 = vmatpush1.bf16.msra.mxu0 0
  %1960 = vmatprep.subr.bf16.mxu0 0
  %1961 = vmatpush1.bf16.msra.mxu0 0
  %1962 = vmatprep.subr.bf16.mxu0 0
  %1963 = vmatpush1.bf16.msra.mxu0 0
  %1964 = vmatprep.subr.bf16.mxu0 0
  %1965 = vmatpush1.bf16.msra.mxu0 0
  %1966 = vmatprep.subr.bf16.mxu0 0
  %1967 = vmatpush1.bf16.msra.mxu0 0
  %1968 = vmatprep.subr.bf16.mxu0 0
  %1969 = vmatpush1.bf16.msra.mxu0 0
  %1970 = vmatprep.subr.bf16.mxu0 0
  %1971 = vmatpush1.bf16.msra.mxu0 0
  %1972 = vmatprep.mubr.bf16.mxu0 0
  %1973 = vmatmul.mubr.bf16.gmra.mrb[0].mxu0 %v1938
  %v1974 = vpop.f32.mrb[0].mxu0
  %v1975 = vadd.f32 %v1912, %v1974
  %v1976 = vpop.f32.mrb[0].mxu0
  %v1977 = vpop.f32.mrb[0].mxu0
  %v1978 = vadd.f32 %v1912, %v1977
  %v1979 = vpop.f32.mrb[0].mxu0
  %1980 = vdwg.mxu0
  %v1981 = vadd.f32 %v1975, %v1813
  %v1982 = vadd.f32 %v1978, %v1814
  %v1983 = vsel %vm18, %v1981, 0.0
  %1984 = vadd.xlane.f32.xlu0 %v1983
  %v1985 = vpop.xlane.xlu0 %1984
  %v1986 = vsel %vm18, %v1982, 0.0
  %1987 = vadd.xlane.f32.xlu0 %v1986
  %v1988 = vpop.xlane.xlu0 %1987
  %v1989 = vmul.f32 %v1981, %v1981
  %v1990 = vmul.f32 %v1982, %v1982
  %v1991 = vsel %vm18, %v1989, 0.0
  %1992 = vadd.xlane.f32.xlu0 %v1991
  %v1993 = vpop.xlane.xlu0 %1992
  %v1994 = vsel %vm18, %v1990, 0.0
  %1995 = vadd.xlane.f32.xlu0 %v1994
  %v1996 = vpop.xlane.xlu0 %1995
  %v1997 = vmul.f32 %v1985, 0.03125
  %v1998 = vmul.f32 %v1988, 0.03125
  %v1999 = vmul.f32 %v1993, 0.03125
  %v2000 = vmul.f32 %v1996, 0.03125
  %v2001 = vmul.f32 %v1997, %v1997
  %v2002 = vmul.f32 %v1998, %v1998
  %v2003 = vsub.f32 %v1999, %v2001
  %v2004 = vsub.f32 %v2000, %v2002
  %v2005 = vsub.f32 %v1981, %v1997
  %v2006 = vsub.f32 %v1982, %v1998
  %v2007 = vadd.f32 %v2003, 1e-12
  %v2008 = vadd.f32 %v2004, 1e-12
  %v2009 = vrsqrt.pop %v2007
  %v2010 = vrsqrt.pop %v2008
  %v2011 = vmul.f32 %v2005, %v2009
  %v2012 = vmul.f32 %v2006, %v2010
  %v2013 = vld [vmem:[%s0 + $0x4a] sm:$0x1]
  %v2014 = vlaneseq
  %v2015 = vshrl.u32 %v2014, 7
  %v2016 = vsub.s32 0, %v2015
  %v2017 = vrot.slane %v2013, %v2016
  %v2018 = vmul.f32 %v2011, %v2017
  %v2019 = vmul.f32 %v2012, %v2017
  %v2020 = vld [vmem:[%s0 + $0x4b] sm:$0x1]
  %v2021 = vlaneseq
  %v2022 = vshrl.u32 %v2021, 7
  %v2023 = vsub.s32 0, %v2022
  %v2024 = vrot.slane %v2020, %v2023
  %v2025 = vadd.f32 %v2018, %v2024
  %v2026 = vadd.f32 %v2019, %v2024
  %v2027 = vadd.f32 %v2025, %v14
  %v2028 = vadd.f32 %v2026, %v15
  %v2029 = vpack.c.bf16 %v2028, %v2027
  %v2030 = vld [vmem:[%s1 + $0x140] sm:$0xf]
  %v2031 = vld [vmem:[%s1 + $0x144] sm:$0xf]
  %v2032 = vld [vmem:[%s1 + $0x148] sm:$0xf]
  %v2033 = vld [vmem:[%s1 + $0x14c] sm:$0xf]
  %v2034 = vld [vmem:[%s0 + $0x4c] sm:$0x1]
  %v2035 = vlaneseq
  %v2036 = vshrl.u32 %v2035, 7
  %v2037 = vsub.s32 0, %v2036
  %v2038 = vrot.slane %v2034, %v2037
  %v2043 = vunpack.c.l.b16 %v2030
  %v2044 = vunpack.c.l.b16 %v2031
  %v2045 = vunpack.c.l.b16 %v2032
  %v2046 = vunpack.c.l.b16 %v2033
  %v2047 = vpack.c.b16 %v2044, %v2043
  %v2048 = vpack.c.b16 %v2046, %v2045
  %v2052 = vsel %vm18, %v2029, 0
  %2054 = vmatprep.subr.bf16.mxu0 0
  %2055 = vmatpush1.bf16.msra.mxu0 %v2047
  %2056 = vmatprep.subr.bf16.mxu0 0
  %2057 = vmatpush1.bf16.msra.mxu0 %v2048
  %2058 = vmatprep.subr.bf16.mxu0 0
  %2059 = vmatpush1.bf16.msra.mxu0 0
  %2060 = vmatprep.subr.bf16.mxu0 0
  %2061 = vmatpush1.bf16.msra.mxu0 0
  %2062 = vmatprep.subr.bf16.mxu0 0
  %2063 = vmatpush1.bf16.msra.mxu0 0
  %2064 = vmatprep.subr.bf16.mxu0 0
  %2065 = vmatpush1.bf16.msra.mxu0 0
  %2066 = vmatprep.subr.bf16.mxu0 0
  %2067 = vmatpush1.bf16.msra.mxu0 0
  %2068 = vmatprep.subr.bf16.mxu0 0
  %2069 = vmatpush1.bf16.msra.mxu0 0
  %2070 = vmatprep.subr.bf16.mxu0 0
  %2071 = vmatpush1.bf16.msra.mxu0 0
  %2072 = vmatprep.subr.bf16.mxu0 0
  %2073 = vmatpush1.bf16.msra.mxu0 0
  %2074 = vmatprep.subr.bf16.mxu0 0
  %2075 = vmatpush1.bf16.msra.mxu0 0
  %2076 = vmatprep.subr.bf16.mxu0 0
  %2077 = vmatpush1.bf16.msra.mxu0 0
  %2078 = vmatprep.subr.bf16.mxu0 0
  %2079 = vmatpush1.bf16.msra.mxu0 0
  %2080 = vmatprep.subr.bf16.mxu0 0
  %2081 = vmatpush1.bf16.msra.mxu0 0
  %2082 = vmatprep.subr.bf16.mxu0 0
  %2083 = vmatpush1.bf16.msra.mxu0 0
  %2084 = vmatprep.subr.bf16.mxu0 0
  %2085 = vmatpush1.bf16.msra.mxu0 0
  %2086 = vmatprep.mubr.bf16.mxu0 0
  %2087 = vmatmul.mubr.bf16.gmra.mrb[0].mxu0 %v2052
  %v2088 = vpop.f32.mrb[0].mxu0
  %v2089 = vadd.f32 %v2038, %v2088
  %v2090 = vpop.f32.mrb[0].mxu0
  %v2091 = vpop.f32.mrb[0].mxu0
  %v2092 = vadd.f32 %v2038, %v2091
  %v2093 = vpop.f32.mrb[0].mxu0
  %2094 = vdwg.mxu0
  %2095 = vst [vmem:[%s2] sm:$0xff] %v2089
  %2096 = vst [vmem:[%s2 + $0x8] sm:$0xff] %v2092
  // Predicated region
  $region10: #{_lambda_.1} parent=0 // pred_check
    _
  $region11: #{_lambda_.1} parent=0 // pred_check_branch
    %2098 = sbr.rel (0) target = $region13
  $region12: #{_lambda_.1} parent=0 // pred_region
    _
  $region13: #{_lambda_.1} parent=0 // pred_fallthru
    _
  // Predicated region
  $region14: #{_lambda_.1} parent=0 // pred_check
    _
  $region15: #{_lambda_.1} parent=0 // pred_check_branch
    %2100 = sbr.rel (0) target = $region17
  $region16: #{_lambda_.1} parent=0 // pred_region
    _
  $region17: #{_lambda_.1} parent=0 // pred_fallthru
    _

</llo_original>
